<compile_context>
chip_gen: v7x
topology: tpu7x:2x2x1
jax: 0.10.0
libtpu: 0.0.40
codegen_flags: <defaults>
</compile_context>

<pallas_src>
import jax
import jax.numpy as jnp
from jax.experimental import pallas as pl
from jax.experimental.pallas import tpu as pltpu

# ---- config taken from bigram.py ----
N_HEAD = 4
BATCH_SIZE_CFG = 32                       # bigram.py "batch_size"
N_EMBED = N_HEAD * BATCH_SIZE_CFG         # 128
HEAD_SIZE = N_EMBED // N_HEAD             # 32
BLOCK_SIZE = 128                          # max causal context
DROPOUT_P = 0.2                           # eval-mode (identity) in this kernel
LN_EPS = 1e-5                             # torch.nn.LayerNorm default
NEG_BIG = -1e30                           # additive mask value (finite, safe)


def _layer_norm(v, g, b):
    """f32 LayerNorm over the last axis (torch semantics, eps=1e-5)."""
    mu = jnp.mean(v, axis=-1, keepdims=True)
    var = jnp.mean(jnp.square(v - mu), axis=-1, keepdims=True)
    return (v - mu) * jax.lax.rsqrt(var + LN_EPS) * g + b


def block_kernel(x_ref, mask_ref,
                 g1_ref, bln1_ref, wqkv_ref, wproj_ref, bproj_ref,
                 g2_ref, bln2_ref, w1_ref, bff1_ref, w2_ref, bff2_ref,
                 o_ref):
    bt, T, C = x_ref.shape
    M = bt * T
    H, hs = N_HEAD, C // N_HEAD
    bf16 = jnp.bfloat16

    x = x_ref[...].reshape(M, C)                           # (M, C) f32, residual

    # ---------------- x = x + sa(ln1(x)) ----------------
    h1 = _layer_norm(x, g1_ref[...], bln1_ref[...])        # f32

    # fused QKV projection: bf16 MXU operands, f32 accumulation
    qkv = jnp.dot(h1.astype(bf16), wqkv_ref[...],
                  preferred_element_type=jnp.float32)      # (M, 3C) f32
    qkv3 = qkv.reshape(bt, T, 3 * C)
    # NOTE: torch code scales scores by C**-0.5 with C = n_embed (not
    # head_size); kept exactly, folded into q (fewer VPU multiplies).
    q3 = (qkv3[:, :, :C] * (C ** -0.5)).astype(bf16)       # f32 temps die here
    k3 = qkv3[:, :, C:2 * C].astype(bf16)
    v3 = qkv3[:, :, 2 * C:].astype(bf16)

    # additive causal bias, broadcast hoisted out of the per-head loop
    bias_b = pl.broadcast_to(mask_ref[...][None, :, :], (bt, T, T))

    # Per-head attention.  The unnormalized PV output of each head is
    # immediately projected through the matching (hs, C) row-block of Wproj
    # and accumulated into a lane-dense (M, C) f32 accumulator -> no VMEM
    # scratch round-trip, no lane-masked stores.
    sa_acc = jnp.zeros((M, C), jnp.float32)
    for h in range(H):
        sl = slice(h * hs, (h + 1) * hs)
        s = jnp.einsum('btd,bsd->bts', q3[:, :, sl], k3[:, :, sl],
                       preferred_element_type=jnp.float32)       # (bt,T,T) f32
        s = s + bias_b
        m = jnp.max(s, axis=-1, keepdims=True)
        e = jnp.exp(s - m)
        denom = jnp.sum(e, axis=-1, keepdims=True)               # (bt,T,1) f32
        # TODO(synk): dropout(p=0.2) on the attention weights is identity in
        #             eval mode; training would use pltpu.prng_random_bits.
        oh = jnp.einsum('bts,bsd->btd', e.astype(bf16), v3[:, :, sl],
                        preferred_element_type=jnp.float32)      # unnormalized
        oh = oh * pl.reciprocal(denom, approx=True)              # (bt,T,hs) muls
        sa_acc = sa_acc + jnp.dot(oh.reshape(M, hs).astype(bf16),
                                  wproj_ref[sl, :],
                                  preferred_element_type=jnp.float32)

    x1 = x + sa_acc + bproj_ref[...]                             # residual 1 (f32)

    # ---------------- x = x + ffwd(ln2(x)) ----------------
    h2 = _layer_norm(x1, g2_ref[...], bln2_ref[...])
    hid = jnp.dot(h2.astype(bf16), w1_ref[...],
                  preferred_element_type=jnp.float32) + bff1_ref[...]
    hid = jnp.maximum(hid, 0.0).astype(bf16)                     # ReLU in f32
    ff = jnp.dot(hid, w2_ref[...],
                 preferred_element_type=jnp.float32) + bff2_ref[...]
    # TODO(synk): FFN / projection dropout(p=0.2) is identity in eval mode.

    o_ref[...] = (x1 + ff).reshape(bt, T, C).astype(o_ref.dtype)


def _tpu_generation():
    """Best-effort TPU generation (5/6/7); defaults to 6 if unknown."""
    try:
        kind = jax.devices()[0].device_kind.lower()
    except Exception:
        return 6
    for g in (7, 6, 5, 4):
        if f"v{g}" in kind:
            return g
    return 6


def _pick_b_tile(B, T, *, min_steps, row_cap=2048):
    """Largest divisor of B with b_tile*T <= row_cap rows per step while
    keeping at least min(min_steps, B) grid steps."""
    cap = max(1, row_cap // max(T, 1))
    need = min(min_steps, B)
    b_tile = 1
    for d in range(1, B + 1):
        if B % d == 0 and d <= cap and (B // d) >= need:
            b_tile = d
    return b_tile


def transformer_block(x, params, *, b_tile=None):
    """params = (g1, bln1, wqkv, wproj, bproj, g2, bln2, w1, bff1, w2, bff2)."""
    B, T, C = x.shape
    assert C == N_EMBED and T <= BLOCK_SIZE

    gen = _tpu_generation()
    # v7x: keep >=4 grid steps so each of the 2 TensorCores retains >=2
    # pipelined steps; v5e/v6e (128 MiB VMEM) just keep >=2 steps.
    min_steps = 4 if gen >= 7 else 2
    if b_tile is None:
        b_tile = _pick_b_tile(B, T, min_steps=min_steps)
    assert B % b_tile == 0
    n_steps = B // b_tile
    # ~3-10 MB actually used per step; leave explicit headroom vs defaults.
    vmem_limit = (48 if gen >= 7 else 96) * 1024 * 1024

    (g1, bln1, wqkv, wproj, bproj, g2, bln2, w1, bff1, w2, bff2) = params
    bf16 = jnp.bfloat16
    # bf16 MXU operands; biases / LN params / residual stay f32.
    wqkv = wqkv.astype(bf16)
    wproj = wproj.astype(bf16)
    w1 = w1.astype(bf16)
    w2 = w2.astype(bf16)

    # precomputed additive causal bias (hoisted out of the kernel body)
    mask = jnp.where(jnp.tril(jnp.ones((T, T), dtype=bool)),
                     0.0, NEG_BIG).astype(jnp.float32)

    def invariant(shape):
        # grid-invariant operand (weights / biases / mask); full-array block.
        return pl.BlockSpec(shape, lambda b: (0,) * len(shape))

    return pl.pallas_call(
        block_kernel,
        out_shape=jax.ShapeDtypeStruct((B, T, C), jnp.float32),
        grid_spec=pltpu.PrefetchScalarGridSpec(
            num_scalar_prefetch=0,
            grid=(n_steps,),
            in_specs=[
                pl.BlockSpec((b_tile, T, C), lambda b: (b, 0, 0)),   # x
                invariant((T, T)),                                    # causal bias
                invariant((1, C)), invariant((1, C)),                 # ln1 gamma/beta
                invariant((C, 3 * C)),                                # Wqkv (bf16)
                invariant((C, C)), invariant((1, C)),                 # Wproj, bproj
                invariant((1, C)), invariant((1, C)),                 # ln2 gamma/beta
                invariant((C, 4 * C)), invariant((1, 4 * C)),         # W1, b1
                invariant((4 * C, C)), invariant((1, C)),             # W2, b2
            ],
            out_specs=pl.BlockSpec((b_tile, T, C), lambda b: (b, 0, 0)),
        ),
        compiler_params=pltpu.CompilerParams(
            dimension_semantics=("parallel",),
            vmem_limit_bytes=vmem_limit),
    )(x, mask, g1, bln1, wqkv, wproj, bproj, g2, bln2, w1, bff1, w2, bff2)


def block_reference(x, params):
    """Pure-JAX f32 reference mirroring the PyTorch Block forward (eval mode)."""
    (g1, bln1, wqkv, wproj, bproj, g2, bln2, w1, bff1, w2, bff2) = params
    B, T, C = x.shape
    H, hs = N_HEAD, C // N_HEAD

    def ln(v, g, b):
        mu = v.mean(-1, keepdims=True)
        var = ((v - mu) ** 2).mean(-1, keepdims=True)
        return (v - mu) / jnp.sqrt(var + LN_EPS) * g + b

    h1 = ln(x, g1, bln1)
    qkv = h1 @ wqkv
    q = qkv[..., :C].reshape(B, T, H, hs)
    k = qkv[..., C:2 * C].reshape(B, T, H, hs)
    v = qkv[..., 2 * C:].reshape(B, T, H, hs)
    wei = jnp.einsum('bthd,bshd->bhts', q, k) * (C ** -0.5)
    causal = jnp.tril(jnp.ones((T, T), dtype=bool))
    wei = jnp.where(causal[None, None], wei, -jnp.inf)
    wei = jax.nn.softmax(wei, axis=-1)
    out = jnp.einsum('bhts,bshd->bthd', wei, v).reshape(B, T, C)
    x1 = x + out @ wproj + bproj
    h2 = ln(x1, g2, bln2)
    ff = jnp.maximum(h2 @ w1 + bff1, 0.0) @ w2 + bff2
    return x1 + ff


if __name__ == "__main__":
    B, T, C = 2, 8, N_EMBED               # small shapes: batch=2, seq=8, embed=128
    key = jax.random.PRNGKey(0)
    ks = jax.random.split(key, 14)

    bound_c = 1.0 / (C ** 0.5)
    bound_4c = 1.0 / ((4 * C) ** 0.5)
    u = lambda k, shape, b: jax.random.uniform(k, shape, jnp.float32, -b, b)

    x = jax.random.normal(ks[0], (B, T, C), dtype=jnp.float32)

    # per-head q/k/v packed column-wise, then fused into one (C, 3C) weight
    wq = u(ks[1], (C, C), bound_c)
    wk = u(ks[2], (C, C), bound_c)
    wv = u(ks[3], (C, C), bound_c)
    wqkv = jnp.concatenate([wq, wk, wv], axis=1)            # (C, 3C)

    wproj = u(ks[4], (C, C), bound_c)
    bproj = u(ks[5], (1, C), bound_c)
    w1 = u(ks[6], (C, 4 * C), bound_c)
    bff1 = u(ks[7], (1, 4 * C), bound_c)
    w2 = u(ks[8], (4 * C, C), bound_4c)
    bff2 = u(ks[9], (1, C), bound_4c)

    g1 = 1.0 + 0.1 * u(ks[10], (1, C), 1.0)                 # LN affine params
    bln1 = 0.1 * u(ks[11], (1, C), 1.0)
    g2 = 1.0 + 0.1 * u(ks[12], (1, C), 1.0)
    bln2 = 0.1 * u(ks[13], (1, C), 1.0)

    params = (g1, bln1, wqkv, wproj, bproj, g2, bln2, w1, bff1, w2, bff2)

    y = transformer_block(x, params)
    y = jax.block_until_ready(y)

    y_ref = block_reference(x, params)
    assert y.shape == (B, T, C)
    # tolerance covers bf16 MXU operands + approx reciprocal in the kernel
    assert jnp.allclose(y, y_ref, atol=5e-2, rtol=5e-2), "mismatch vs reference"
    print("KERNEL_OK")
</pallas_src>

<mosaic_0001>
module attributes {stable_mosaic.version = 11 : i64} {
  func.func @block_kernel(%arg0: i32, %arg1: memref<1x8x128xf32, #tpu.memory_space<vmem>>, %arg2: memref<8x8xf32, #tpu.memory_space<vmem>>, %arg3: memref<1x128xf32, #tpu.memory_space<vmem>>, %arg4: memref<1x128xf32, #tpu.memory_space<vmem>>, %arg5: memref<128x384xbf16, #tpu.memory_space<vmem>>, %arg6: memref<128x128xbf16, #tpu.memory_space<vmem>>, %arg7: memref<1x128xf32, #tpu.memory_space<vmem>>, %arg8: memref<1x128xf32, #tpu.memory_space<vmem>>, %arg9: memref<1x128xf32, #tpu.memory_space<vmem>>, %arg10: memref<128x512xbf16, #tpu.memory_space<vmem>>, %arg11: memref<1x512xf32, #tpu.memory_space<vmem>>, %arg12: memref<512x128xbf16, #tpu.memory_space<vmem>>, %arg13: memref<1x128xf32, #tpu.memory_space<vmem>>, %arg14: memref<1x8x128xf32, #tpu.memory_space<vmem>>) attributes {dimension_semantics = [#tpu.dimension_semantics<parallel>], iteration_bounds = array<i64: 2>, scalar_prefetch = 0 : i64, scratch_operands = 0 : i64, tpu.core_type = #tpu.core_type<tc>, window_params = [{transform_indices = @transform_0, window_bounds = array<i64: 1, 8, 128>}, {pipeline_mode = #tpu.pipeline_mode<synchronous>, transform_indices = @transform_1, window_bounds = array<i64: 8, 8>}, {pipeline_mode = #tpu.pipeline_mode<synchronous>, transform_indices = @transform_2, window_bounds = array<i64: 1, 128>}, {pipeline_mode = #tpu.pipeline_mode<synchronous>, transform_indices = @transform_3, window_bounds = array<i64: 1, 128>}, {pipeline_mode = #tpu.pipeline_mode<synchronous>, transform_indices = @transform_4, window_bounds = array<i64: 128, 384>}, {pipeline_mode = #tpu.pipeline_mode<synchronous>, transform_indices = @transform_5, window_bounds = array<i64: 128, 128>}, {pipeline_mode = #tpu.pipeline_mode<synchronous>, transform_indices = @transform_6, window_bounds = array<i64: 1, 128>}, {pipeline_mode = #tpu.pipeline_mode<synchronous>, transform_indices = @transform_7, window_bounds = array<i64: 1, 128>}, {pipeline_mode = #tpu.pipeline_mode<synchronous>, transform_indices = @transform_8, window_bounds = array<i64: 1, 128>}, {pipeline_mode = #tpu.pipeline_mode<synchronous>, transform_indices = @transform_9, window_bounds = array<i64: 128, 512>}, {pipeline_mode = #tpu.pipeline_mode<synchronous>, transform_indices = @transform_10, window_bounds = array<i64: 1, 512>}, {pipeline_mode = #tpu.pipeline_mode<synchronous>, transform_indices = @transform_11, window_bounds = array<i64: 512, 128>}, {pipeline_mode = #tpu.pipeline_mode<synchronous>, transform_indices = @transform_12, window_bounds = array<i64: 1, 128>}, {transform_indices = @transform_13, window_bounds = array<i64: 1, 8, 128>}]} {
    %c0 = arith.constant 0 : index
    %c0_0 = arith.constant 0 : index
    %c0_1 = arith.constant 0 : index
    %0 = vector.load %arg1[%c0, %c0_0, %c0_1] : memref<1x8x128xf32, #tpu.memory_space<vmem>>, vector<1x8x128xf32>
    %1 = vector.shape_cast %0 : vector<1x8x128xf32> to vector<8x128xf32>
    %c0_2 = arith.constant 0 : index
    %c0_3 = arith.constant 0 : index
    %2 = vector.load %arg3[%c0_2, %c0_3] : memref<1x128xf32, #tpu.memory_space<vmem>>, vector<1x128xf32>
    %c0_4 = arith.constant 0 : index
    %c0_5 = arith.constant 0 : index
    %3 = vector.load %arg4[%c0_4, %c0_5] : memref<1x128xf32, #tpu.memory_space<vmem>>, vector<1x128xf32>
    %cst = arith.constant dense<0.000000e+00> : vector<8xf32>
    %4 = vector.multi_reduction <add>, %1, %cst [1] : vector<8x128xf32> to vector<8xf32>
    %5 = vector.shape_cast %4 : vector<8xf32> to vector<8x1xf32>
    %cst_6 = arith.constant 1.280000e+02 : f32
    %6 = vector.broadcast %cst_6 : f32 to vector<8x1xf32>
    %7 = arith.divf %5, %6 : vector<8x1xf32>
    %8 = vector.broadcast %7 : vector<8x1xf32> to vector<8x128xf32>
    %9 = arith.subf %1, %8 : vector<8x128xf32>
    %10 = arith.mulf %9, %9 : vector<8x128xf32>
    %cst_7 = arith.constant dense<0.000000e+00> : vector<8xf32>
    %11 = vector.multi_reduction <add>, %10, %cst_7 [1] : vector<8x128xf32> to vector<8xf32>
    %12 = vector.shape_cast %11 : vector<8xf32> to vector<8x1xf32>
    %cst_8 = arith.constant 1.280000e+02 : f32
    %13 = vector.broadcast %cst_8 : f32 to vector<8x1xf32>
    %14 = arith.divf %12, %13 : vector<8x1xf32>
    %15 = vector.broadcast %7 : vector<8x1xf32> to vector<8x128xf32>
    %16 = arith.subf %1, %15 : vector<8x128xf32>
    %cst_9 = arith.constant 9.99999974E-6 : f32
    %17 = vector.broadcast %cst_9 : f32 to vector<8x1xf32>
    %18 = arith.addf %14, %17 : vector<8x1xf32>
    %19 = math.rsqrt %18 : vector<8x1xf32>
    %20 = vector.broadcast %19 : vector<8x1xf32> to vector<8x128xf32>
    %21 = arith.mulf %16, %20 : vector<8x128xf32>
    %22 = vector.broadcast %2 : vector<1x128xf32> to vector<8x128xf32>
    %23 = arith.mulf %21, %22 : vector<8x128xf32>
    %24 = vector.broadcast %3 : vector<1x128xf32> to vector<8x128xf32>
    %25 = arith.addf %23, %24 : vector<8x128xf32>
    %26 = arith.truncf %25 : vector<8x128xf32> to vector<8x128xbf16>
    %c0_10 = arith.constant 0 : index
    %c0_11 = arith.constant 0 : index
    %27 = vector.load %arg5[%c0_10, %c0_11] : memref<128x384xbf16, #tpu.memory_space<vmem>>, vector<128x384xbf16>
    %cst_12 = arith.constant dense<0.000000e+00> : vector<8x384xf32>
    %28 = tpu.matmul %26, %27, %cst_12 {dimension_numbers = #tpu.dot_dimension_numbers<[1], [0], [0], [1], [0, 0, 1, 1], [], []>} : vector<8x128xbf16>, vector<128x384xbf16>, vector<8x384xf32> -> vector<8x384xf32>
    %29 = vector.shape_cast %28 : vector<8x384xf32> to vector<1x8x384xf32>
    %30 = vector.extract_strided_slice %29 {offsets = [0, 0, 0], sizes = [1, 8, 128], strides = [1, 1, 1]} : vector<1x8x384xf32> to vector<1x8x128xf32>
    %cst_13 = arith.constant 0.0883883461 : f32
    %31 = vector.broadcast %cst_13 : f32 to vector<1x8x128xf32>
    %32 = arith.mulf %30, %31 : vector<1x8x128xf32>
    %33 = arith.truncf %32 : vector<1x8x128xf32> to vector<1x8x128xbf16>
    %34 = vector.extract_strided_slice %29 {offsets = [0, 0, 128], sizes = [1, 8, 128], strides = [1, 1, 1]} : vector<1x8x384xf32> to vector<1x8x128xf32>
    %35 = arith.truncf %34 : vector<1x8x128xf32> to vector<1x8x128xbf16>
    %36 = vector.extract_strided_slice %29 {offsets = [0, 0, 256], sizes = [1, 8, 128], strides = [1, 1, 1]} : vector<1x8x384xf32> to vector<1x8x128xf32>
    %37 = arith.truncf %36 : vector<1x8x128xf32> to vector<1x8x128xbf16>
    %c0_14 = arith.constant 0 : index
    %c0_15 = arith.constant 0 : index
    %38 = vector.load %arg2[%c0_14, %c0_15] : memref<8x8xf32, #tpu.memory_space<vmem>>, vector<8x8xf32>
    %39 = vector.shape_cast %38 : vector<8x8xf32> to vector<1x8x8xf32>
    %cst_16 = arith.constant 0.000000e+00 : f32
    %40 = vector.broadcast %cst_16 : f32 to vector<8x128xf32>
    %41 = vector.extract_strided_slice %33 {offsets = [0, 0, 0], sizes = [1, 8, 32], strides = [1, 1, 1]} : vector<1x8x128xbf16> to vector<1x8x32xbf16>
    %42 = vector.extract_strided_slice %35 {offsets = [0, 0, 0], sizes = [1, 8, 32], strides = [1, 1, 1]} : vector<1x8x128xbf16> to vector<1x8x32xbf16>
    "tpu.trace_start"() <{level = 10 : i32, message = "btd,bsd->bts"}> : () -> ()
    %cst_17 = arith.constant dense<0.000000e+00> : vector<1x8x8xf32>
    %43 = tpu.matmul %41, %42, %cst_17 {dimension_numbers = #tpu.dot_dimension_numbers<[2], [2], [1], [1], [0, 0, 0, 1, 1, 1], [0], [0]>} : vector<1x8x32xbf16>, vector<1x8x32xbf16>, vector<1x8x8xf32> -> vector<1x8x8xf32>
    "tpu.trace_stop"() : () -> ()
    %44 = arith.addf %43, %39 : vector<1x8x8xf32>
    %cst_18 = arith.constant dense<0xFF800000> : vector<1x8xf32>
    %45 = vector.multi_reduction <maximumf>, %44, %cst_18 [2] : vector<1x8x8xf32> to vector<1x8xf32>
    %46 = vector.shape_cast %45 : vector<1x8xf32> to vector<1x8x1xf32>
    %47 = vector.broadcast %46 : vector<1x8x1xf32> to vector<1x8x8xf32>
    %48 = arith.subf %44, %47 : vector<1x8x8xf32>
    %49 = math.exp %48 : vector<1x8x8xf32>
    %cst_19 = arith.constant dense<0.000000e+00> : vector<1x8xf32>
    %50 = vector.multi_reduction <add>, %49, %cst_19 [2] : vector<1x8x8xf32> to vector<1x8xf32>
    %51 = vector.shape_cast %50 : vector<1x8xf32> to vector<1x8x1xf32>
    %52 = arith.truncf %49 : vector<1x8x8xf32> to vector<1x8x8xbf16>
    %53 = vector.extract_strided_slice %37 {offsets = [0, 0, 0], sizes = [1, 8, 32], strides = [1, 1, 1]} : vector<1x8x128xbf16> to vector<1x8x32xbf16>
    "tpu.trace_start"() <{level = 10 : i32, message = "bts,bsd->btd"}> : () -> ()
    %cst_20 = arith.constant dense<0.000000e+00> : vector<1x8x32xf32>
    %54 = tpu.matmul %52, %53, %cst_20 {dimension_numbers = #tpu.dot_dimension_numbers<[2], [1], [1], [2], [0, 0, 0, 1, 1, 2], [0], [0]>} : vector<1x8x8xbf16>, vector<1x8x32xbf16>, vector<1x8x32xf32> -> vector<1x8x32xf32>
    "tpu.trace_stop"() : () -> ()
    %55 = tpu.reciprocal %51 {approx = true} : vector<1x8x1xf32> -> vector<1x8x1xf32>
    %56 = vector.broadcast %55 : vector<1x8x1xf32> to vector<1x8x32xf32>
    %57 = arith.mulf %54, %56 : vector<1x8x32xf32>
    %58 = vector.shape_cast %57 : vector<1x8x32xf32> to vector<8x32xf32>
    %59 = arith.truncf %58 : vector<8x32xf32> to vector<8x32xbf16>
    %c0_21 = arith.constant 0 : index
    %c0_22 = arith.constant 0 : index
    %60 = vector.load %arg6[%c0_21, %c0_22] : memref<128x128xbf16, #tpu.memory_space<vmem>>, vector<32x128xbf16>
    %cst_23 = arith.constant dense<0.000000e+00> : vector<8x128xf32>
    %61 = tpu.matmul %59, %60, %cst_23 {dimension_numbers = #tpu.dot_dimension_numbers<[1], [0], [0], [1], [0, 0, 1, 1], [], []>} : vector<8x32xbf16>, vector<32x128xbf16>, vector<8x128xf32> -> vector<8x128xf32>
    %62 = arith.addf %40, %61 : vector<8x128xf32>
    %63 = vector.extract_strided_slice %33 {offsets = [0, 0, 32], sizes = [1, 8, 32], strides = [1, 1, 1]} : vector<1x8x128xbf16> to vector<1x8x32xbf16>
    %64 = vector.extract_strided_slice %35 {offsets = [0, 0, 32], sizes = [1, 8, 32], strides = [1, 1, 1]} : vector<1x8x128xbf16> to vector<1x8x32xbf16>
    "tpu.trace_start"() <{level = 10 : i32, message = "btd,bsd->bts"}> : () -> ()
    %cst_24 = arith.constant dense<0.000000e+00> : vector<1x8x8xf32>
    %65 = tpu.matmul %63, %64, %cst_24 {dimension_numbers = #tpu.dot_dimension_numbers<[2], [2], [1], [1], [0, 0, 0, 1, 1, 1], [0], [0]>} : vector<1x8x32xbf16>, vector<1x8x32xbf16>, vector<1x8x8xf32> -> vector<1x8x8xf32>
    "tpu.trace_stop"() : () -> ()
    %66 = arith.addf %65, %39 : vector<1x8x8xf32>
    %cst_25 = arith.constant dense<0xFF800000> : vector<1x8xf32>
    %67 = vector.multi_reduction <maximumf>, %66, %cst_25 [2] : vector<1x8x8xf32> to vector<1x8xf32>
    %68 = vector.shape_cast %67 : vector<1x8xf32> to vector<1x8x1xf32>
    %69 = vector.broadcast %68 : vector<1x8x1xf32> to vector<1x8x8xf32>
    %70 = arith.subf %66, %69 : vector<1x8x8xf32>
    %71 = math.exp %70 : vector<1x8x8xf32>
    %cst_26 = arith.constant dense<0.000000e+00> : vector<1x8xf32>
    %72 = vector.multi_reduction <add>, %71, %cst_26 [2] : vector<1x8x8xf32> to vector<1x8xf32>
    %73 = vector.shape_cast %72 : vector<1x8xf32> to vector<1x8x1xf32>
    %74 = arith.truncf %71 : vector<1x8x8xf32> to vector<1x8x8xbf16>
    %75 = vector.extract_strided_slice %37 {offsets = [0, 0, 32], sizes = [1, 8, 32], strides = [1, 1, 1]} : vector<1x8x128xbf16> to vector<1x8x32xbf16>
    "tpu.trace_start"() <{level = 10 : i32, message = "bts,bsd->btd"}> : () -> ()
    %cst_27 = arith.constant dense<0.000000e+00> : vector<1x8x32xf32>
    %76 = tpu.matmul %74, %75, %cst_27 {dimension_numbers = #tpu.dot_dimension_numbers<[2], [1], [1], [2], [0, 0, 0, 1, 1, 2], [0], [0]>} : vector<1x8x8xbf16>, vector<1x8x32xbf16>, vector<1x8x32xf32> -> vector<1x8x32xf32>
    "tpu.trace_stop"() : () -> ()
    %77 = tpu.reciprocal %73 {approx = true} : vector<1x8x1xf32> -> vector<1x8x1xf32>
    %78 = vector.broadcast %77 : vector<1x8x1xf32> to vector<1x8x32xf32>
    %79 = arith.mulf %76, %78 : vector<1x8x32xf32>
    %80 = vector.shape_cast %79 : vector<1x8x32xf32> to vector<8x32xf32>
    %81 = arith.truncf %80 : vector<8x32xf32> to vector<8x32xbf16>
    %c32 = arith.constant 32 : index
    %c0_28 = arith.constant 0 : index
    %82 = vector.load %arg6[%c32, %c0_28] : memref<128x128xbf16, #tpu.memory_space<vmem>>, vector<32x128xbf16>
    %cst_29 = arith.constant dense<0.000000e+00> : vector<8x128xf32>
    %83 = tpu.matmul %81, %82, %cst_29 {dimension_numbers = #tpu.dot_dimension_numbers<[1], [0], [0], [1], [0, 0, 1, 1], [], []>} : vector<8x32xbf16>, vector<32x128xbf16>, vector<8x128xf32> -> vector<8x128xf32>
    %84 = arith.addf %62, %83 : vector<8x128xf32>
    %85 = vector.extract_strided_slice %33 {offsets = [0, 0, 64], sizes = [1, 8, 32], strides = [1, 1, 1]} : vector<1x8x128xbf16> to vector<1x8x32xbf16>
    %86 = vector.extract_strided_slice %35 {offsets = [0, 0, 64], sizes = [1, 8, 32], strides = [1, 1, 1]} : vector<1x8x128xbf16> to vector<1x8x32xbf16>
    "tpu.trace_start"() <{level = 10 : i32, message = "btd,bsd->bts"}> : () -> ()
    %cst_30 = arith.constant dense<0.000000e+00> : vector<1x8x8xf32>
    %87 = tpu.matmul %85, %86, %cst_30 {dimension_numbers = #tpu.dot_dimension_numbers<[2], [2], [1], [1], [0, 0, 0, 1, 1, 1], [0], [0]>} : vector<1x8x32xbf16>, vector<1x8x32xbf16>, vector<1x8x8xf32> -> vector<1x8x8xf32>
    "tpu.trace_stop"() : () -> ()
    %88 = arith.addf %87, %39 : vector<1x8x8xf32>
    %cst_31 = arith.constant dense<0xFF800000> : vector<1x8xf32>
    %89 = vector.multi_reduction <maximumf>, %88, %cst_31 [2] : vector<1x8x8xf32> to vector<1x8xf32>
    %90 = vector.shape_cast %89 : vector<1x8xf32> to vector<1x8x1xf32>
    %91 = vector.broadcast %90 : vector<1x8x1xf32> to vector<1x8x8xf32>
    %92 = arith.subf %88, %91 : vector<1x8x8xf32>
    %93 = math.exp %92 : vector<1x8x8xf32>
    %cst_32 = arith.constant dense<0.000000e+00> : vector<1x8xf32>
    %94 = vector.multi_reduction <add>, %93, %cst_32 [2] : vector<1x8x8xf32> to vector<1x8xf32>
    %95 = vector.shape_cast %94 : vector<1x8xf32> to vector<1x8x1xf32>
    %96 = arith.truncf %93 : vector<1x8x8xf32> to vector<1x8x8xbf16>
    %97 = vector.extract_strided_slice %37 {offsets = [0, 0, 64], sizes = [1, 8, 32], strides = [1, 1, 1]} : vector<1x8x128xbf16> to vector<1x8x32xbf16>
    "tpu.trace_start"() <{level = 10 : i32, message = "bts,bsd->btd"}> : () -> ()
    %cst_33 = arith.constant dense<0.000000e+00> : vector<1x8x32xf32>
    %98 = tpu.matmul %96, %97, %cst_33 {dimension_numbers = #tpu.dot_dimension_numbers<[2], [1], [1], [2], [0, 0, 0, 1, 1, 2], [0], [0]>} : vector<1x8x8xbf16>, vector<1x8x32xbf16>, vector<1x8x32xf32> -> vector<1x8x32xf32>
    "tpu.trace_stop"() : () -> ()
    %99 = tpu.reciprocal %95 {approx = true} : vector<1x8x1xf32> -> vector<1x8x1xf32>
    %100 = vector.broadcast %99 : vector<1x8x1xf32> to vector<1x8x32xf32>
    %101 = arith.mulf %98, %100 : vector<1x8x32xf32>
    %102 = vector.shape_cast %101 : vector<1x8x32xf32> to vector<8x32xf32>
    %103 = arith.truncf %102 : vector<8x32xf32> to vector<8x32xbf16>
    %c64 = arith.constant 64 : index
    %c0_34 = arith.constant 0 : index
    %104 = vector.load %arg6[%c64, %c0_34] : memref<128x128xbf16, #tpu.memory_space<vmem>>, vector<32x128xbf16>
    %cst_35 = arith.constant dense<0.000000e+00> : vector<8x128xf32>
    %105 = tpu.matmul %103, %104, %cst_35 {dimension_numbers = #tpu.dot_dimension_numbers<[1], [0], [0], [1], [0, 0, 1, 1], [], []>} : vector<8x32xbf16>, vector<32x128xbf16>, vector<8x128xf32> -> vector<8x128xf32>
    %106 = arith.addf %84, %105 : vector<8x128xf32>
    %107 = vector.extract_strided_slice %33 {offsets = [0, 0, 96], sizes = [1, 8, 32], strides = [1, 1, 1]} : vector<1x8x128xbf16> to vector<1x8x32xbf16>
    %108 = vector.extract_strided_slice %35 {offsets = [0, 0, 96], sizes = [1, 8, 32], strides = [1, 1, 1]} : vector<1x8x128xbf16> to vector<1x8x32xbf16>
    "tpu.trace_start"() <{level = 10 : i32, message = "btd,bsd->bts"}> : () -> ()
    %cst_36 = arith.constant dense<0.000000e+00> : vector<1x8x8xf32>
    %109 = tpu.matmul %107, %108, %cst_36 {dimension_numbers = #tpu.dot_dimension_numbers<[2], [2], [1], [1], [0, 0, 0, 1, 1, 1], [0], [0]>} : vector<1x8x32xbf16>, vector<1x8x32xbf16>, vector<1x8x8xf32> -> vector<1x8x8xf32>
    "tpu.trace_stop"() : () -> ()
    %110 = arith.addf %109, %39 : vector<1x8x8xf32>
    %cst_37 = arith.constant dense<0xFF800000> : vector<1x8xf32>
    %111 = vector.multi_reduction <maximumf>, %110, %cst_37 [2] : vector<1x8x8xf32> to vector<1x8xf32>
    %112 = vector.shape_cast %111 : vector<1x8xf32> to vector<1x8x1xf32>
    %113 = vector.broadcast %112 : vector<1x8x1xf32> to vector<1x8x8xf32>
    %114 = arith.subf %110, %113 : vector<1x8x8xf32>
    %115 = math.exp %114 : vector<1x8x8xf32>
    %cst_38 = arith.constant dense<0.000000e+00> : vector<1x8xf32>
    %116 = vector.multi_reduction <add>, %115, %cst_38 [2] : vector<1x8x8xf32> to vector<1x8xf32>
    %117 = vector.shape_cast %116 : vector<1x8xf32> to vector<1x8x1xf32>
    %118 = arith.truncf %115 : vector<1x8x8xf32> to vector<1x8x8xbf16>
    %119 = vector.extract_strided_slice %37 {offsets = [0, 0, 96], sizes = [1, 8, 32], strides = [1, 1, 1]} : vector<1x8x128xbf16> to vector<1x8x32xbf16>
    "tpu.trace_start"() <{level = 10 : i32, message = "bts,bsd->btd"}> : () -> ()
    %cst_39 = arith.constant dense<0.000000e+00> : vector<1x8x32xf32>
    %120 = tpu.matmul %118, %119, %cst_39 {dimension_numbers = #tpu.dot_dimension_numbers<[2], [1], [1], [2], [0, 0, 0, 1, 1, 2], [0], [0]>} : vector<1x8x8xbf16>, vector<1x8x32xbf16>, vector<1x8x32xf32> -> vector<1x8x32xf32>
    "tpu.trace_stop"() : () -> ()
    %121 = tpu.reciprocal %117 {approx = true} : vector<1x8x1xf32> -> vector<1x8x1xf32>
    %122 = vector.broadcast %121 : vector<1x8x1xf32> to vector<1x8x32xf32>
    %123 = arith.mulf %120, %122 : vector<1x8x32xf32>
    %124 = vector.shape_cast %123 : vector<1x8x32xf32> to vector<8x32xf32>
    %125 = arith.truncf %124 : vector<8x32xf32> to vector<8x32xbf16>
    %c96 = arith.constant 96 : index
    %c0_40 = arith.constant 0 : index
    %126 = vector.load %arg6[%c96, %c0_40] : memref<128x128xbf16, #tpu.memory_space<vmem>>, vector<32x128xbf16>
    %cst_41 = arith.constant dense<0.000000e+00> : vector<8x128xf32>
    %127 = tpu.matmul %125, %126, %cst_41 {dimension_numbers = #tpu.dot_dimension_numbers<[1], [0], [0], [1], [0, 0, 1, 1], [], []>} : vector<8x32xbf16>, vector<32x128xbf16>, vector<8x128xf32> -> vector<8x128xf32>
    %128 = arith.addf %106, %127 : vector<8x128xf32>
    %129 = arith.addf %1, %128 : vector<8x128xf32>
    %c0_42 = arith.constant 0 : index
    %c0_43 = arith.constant 0 : index
    %130 = vector.load %arg7[%c0_42, %c0_43] : memref<1x128xf32, #tpu.memory_space<vmem>>, vector<1x128xf32>
    %131 = vector.broadcast %130 : vector<1x128xf32> to vector<8x128xf32>
    %132 = arith.addf %129, %131 : vector<8x128xf32>
    %c0_44 = arith.constant 0 : index
    %c0_45 = arith.constant 0 : index
    %133 = vector.load %arg8[%c0_44, %c0_45] : memref<1x128xf32, #tpu.memory_space<vmem>>, vector<1x128xf32>
    %c0_46 = arith.constant 0 : index
    %c0_47 = arith.constant 0 : index
    %134 = vector.load %arg9[%c0_46, %c0_47] : memref<1x128xf32, #tpu.memory_space<vmem>>, vector<1x128xf32>
    %cst_48 = arith.constant dense<0.000000e+00> : vector<8xf32>
    %135 = vector.multi_reduction <add>, %132, %cst_48 [1] : vector<8x128xf32> to vector<8xf32>
    %136 = vector.shape_cast %135 : vector<8xf32> to vector<8x1xf32>
    %cst_49 = arith.constant 1.280000e+02 : f32
    %137 = vector.broadcast %cst_49 : f32 to vector<8x1xf32>
    %138 = arith.divf %136, %137 : vector<8x1xf32>
    %139 = vector.broadcast %138 : vector<8x1xf32> to vector<8x128xf32>
    %140 = arith.subf %132, %139 : vector<8x128xf32>
    %141 = arith.mulf %140, %140 : vector<8x128xf32>
    %cst_50 = arith.constant dense<0.000000e+00> : vector<8xf32>
    %142 = vector.multi_reduction <add>, %141, %cst_50 [1] : vector<8x128xf32> to vector<8xf32>
    %143 = vector.shape_cast %142 : vector<8xf32> to vector<8x1xf32>
    %cst_51 = arith.constant 1.280000e+02 : f32
    %144 = vector.broadcast %cst_51 : f32 to vector<8x1xf32>
    %145 = arith.divf %143, %144 : vector<8x1xf32>
    %146 = vector.broadcast %138 : vector<8x1xf32> to vector<8x128xf32>
    %147 = arith.subf %132, %146 : vector<8x128xf32>
    %cst_52 = arith.constant 9.99999974E-6 : f32
    %148 = vector.broadcast %cst_52 : f32 to vector<8x1xf32>
    %149 = arith.addf %145, %148 : vector<8x1xf32>
    %150 = math.rsqrt %149 : vector<8x1xf32>
    %151 = vector.broadcast %150 : vector<8x1xf32> to vector<8x128xf32>
    %152 = arith.mulf %147, %151 : vector<8x128xf32>
    %153 = vector.broadcast %133 : vector<1x128xf32> to vector<8x128xf32>
    %154 = arith.mulf %152, %153 : vector<8x128xf32>
    %155 = vector.broadcast %134 : vector<1x128xf32> to vector<8x128xf32>
    %156 = arith.addf %154, %155 : vector<8x128xf32>
    %157 = arith.truncf %156 : vector<8x128xf32> to vector<8x128xbf16>
    %c0_53 = arith.constant 0 : index
    %c0_54 = arith.constant 0 : index
    %158 = vector.load %arg10[%c0_53, %c0_54] : memref<128x512xbf16, #tpu.memory_space<vmem>>, vector<128x512xbf16>
    %cst_55 = arith.constant dense<0.000000e+00> : vector<8x512xf32>
    %159 = tpu.matmul %157, %158, %cst_55 {dimension_numbers = #tpu.dot_dimension_numbers<[1], [0], [0], [1], [0, 0, 1, 1], [], []>} : vector<8x128xbf16>, vector<128x512xbf16>, vector<8x512xf32> -> vector<8x512xf32>
    %c0_56 = arith.constant 0 : index
    %c0_57 = arith.constant 0 : index
    %160 = vector.load %arg11[%c0_56, %c0_57] : memref<1x512xf32, #tpu.memory_space<vmem>>, vector<1x512xf32>
    %161 = vector.broadcast %160 : vector<1x512xf32> to vector<8x512xf32>
    %162 = arith.addf %159, %161 : vector<8x512xf32>
    %cst_58 = arith.constant 0.000000e+00 : f32
    %163 = vector.broadcast %cst_58 : f32 to vector<8x512xf32>
    %164 = arith.maximumf %162, %163 : vector<8x512xf32>
    %165 = arith.truncf %164 : vector<8x512xf32> to vector<8x512xbf16>
    %c0_59 = arith.constant 0 : index
    %c0_60 = arith.constant 0 : index
    %166 = vector.load %arg12[%c0_59, %c0_60] : memref<512x128xbf16, #tpu.memory_space<vmem>>, vector<512x128xbf16>
    %cst_61 = arith.constant dense<0.000000e+00> : vector<8x128xf32>
    %167 = tpu.matmul %165, %166, %cst_61 {dimension_numbers = #tpu.dot_dimension_numbers<[1], [0], [0], [1], [0, 0, 1, 1], [], []>} : vector<8x512xbf16>, vector<512x128xbf16>, vector<8x128xf32> -> vector<8x128xf32>
    %c0_62 = arith.constant 0 : index
    %c0_63 = arith.constant 0 : index
    %168 = vector.load %arg13[%c0_62, %c0_63] : memref<1x128xf32, #tpu.memory_space<vmem>>, vector<1x128xf32>
    %169 = vector.broadcast %168 : vector<1x128xf32> to vector<8x128xf32>
    %170 = arith.addf %167, %169 : vector<8x128xf32>
    %171 = arith.addf %132, %170 : vector<8x128xf32>
    %172 = vector.shape_cast %171 : vector<8x128xf32> to vector<1x8x128xf32>
    %c0_64 = arith.constant 0 : index
    %c0_65 = arith.constant 0 : index
    %c0_66 = arith.constant 0 : index
    %173 = vector.load %arg14[%c0_64, %c0_65, %c0_66] : memref<1x8x128xf32, #tpu.memory_space<vmem>>, vector<1x8x128xf32>
    tpu.vector_store %arg14[%c0_64, %c0_65, %c0_66], %172 {strides = array<i32>} : memref<1x8x128xf32, #tpu.memory_space<vmem>>, vector<1x8x128xf32>,
    return
  }
  func.func @transform_0(%arg0: i32) -> (i32, i32, i32) {
    %c0_i32 = arith.constant 0 : i32
    %c0_i32_0 = arith.constant 0 : i32
    %c0_i32_1 = arith.constant 0 : i32
    return %arg0, %c0_i32, %c0_i32_0 : i32, i32, i32
  }
  func.func @transform_1(%arg0: i32) -> (i32, i32) {
    %c0_i32 = arith.constant 0 : i32
    %c0_i32_0 = arith.constant 0 : i32
    %c0_i32_1 = arith.constant 0 : i32
    return %c0_i32, %c0_i32_0 : i32, i32
  }
  func.func @transform_2(%arg0: i32) -> (i32, i32) {
    %c0_i32 = arith.constant 0 : i32
    %c0_i32_0 = arith.constant 0 : i32
    %c0_i32_1 = arith.constant 0 : i32
    return %c0_i32, %c0_i32_0 : i32, i32
  }
  func.func @transform_3(%arg0: i32) -> (i32, i32) {
    %c0_i32 = arith.constant 0 : i32
    %c0_i32_0 = arith.constant 0 : i32
    %c0_i32_1 = arith.constant 0 : i32
    return %c0_i32, %c0_i32_0 : i32, i32
  }
  func.func @transform_4(%arg0: i32) -> (i32, i32) {
    %c0_i32 = arith.constant 0 : i32
    %c0_i32_0 = arith.constant 0 : i32
    %c0_i32_1 = arith.constant 0 : i32
    return %c0_i32, %c0_i32_0 : i32, i32
  }
  func.func @transform_5(%arg0: i32) -> (i32, i32) {
    %c0_i32 = arith.constant 0 : i32
    %c0_i32_0 = arith.constant 0 : i32
    %c0_i32_1 = arith.constant 0 : i32
    return %c0_i32, %c0_i32_0 : i32, i32
  }
  func.func @transform_6(%arg0: i32) -> (i32, i32) {
    %c0_i32 = arith.constant 0 : i32
    %c0_i32_0 = arith.constant 0 : i32
    %c0_i32_1 = arith.constant 0 : i32
    return %c0_i32, %c0_i32_0 : i32, i32
  }
  func.func @transform_7(%arg0: i32) -> (i32, i32) {
    %c0_i32 = arith.constant 0 : i32
    %c0_i32_0 = arith.constant 0 : i32
    %c0_i32_1 = arith.constant 0 : i32
    return %c0_i32, %c0_i32_0 : i32, i32
  }
  func.func @transform_8(%arg0: i32) -> (i32, i32) {
    %c0_i32 = arith.constant 0 : i32
    %c0_i32_0 = arith.constant 0 : i32
    %c0_i32_1 = arith.constant 0 : i32
    return %c0_i32, %c0_i32_0 : i32, i32
  }
  func.func @transform_9(%arg0: i32) -> (i32, i32) {
    %c0_i32 = arith.constant 0 : i32
    %c0_i32_0 = arith.constant 0 : i32
    %c0_i32_1 = arith.constant 0 : i32
    return %c0_i32, %c0_i32_0 : i32, i32
  }
  func.func @transform_10(%arg0: i32) -> (i32, i32) {
    %c0_i32 = arith.constant 0 : i32
    %c0_i32_0 = arith.constant 0 : i32
    %c0_i32_1 = arith.constant 0 : i32
    return %c0_i32, %c0_i32_0 : i32, i32
  }
  func.func @transform_11(%arg0: i32) -> (i32, i32) {
    %c0_i32 = arith.constant 0 : i32
    %c0_i32_0 = arith.constant 0 : i32
    %c0_i32_1 = arith.constant 0 : i32
    return %c0_i32, %c0_i32_0 : i32, i32
  }
  func.func @transform_12(%arg0: i32) -> (i32, i32) {
    %c0_i32 = arith.constant 0 : i32
    %c0_i32_0 = arith.constant 0 : i32
    %c0_i32_1 = arith.constant 0 : i32
    return %c0_i32, %c0_i32_0 : i32, i32
  }
  func.func @transform_13(%arg0: i32) -> (i32, i32, i32) {
    %c0_i32 = arith.constant 0 : i32
    %c0_i32_0 = arith.constant 0 : i32
    %c0_i32_1 = arith.constant 0 : i32
    return %arg0, %c0_i32, %c0_i32_0 : i32, i32, i32
  }
}

</mosaic_0001>

<llo_original>
// kernel: tpu_custom_call.1
$region0: #{tpu_custom_call.1}
  #allocation0 [shape = 'u32[]', space=smem, size = 0x4, offset = 0x4, fixed_abs, tag = 'smem constant byte address 0x4 - core index']
  #allocation1 [shape = 'u32[144,128]{1,0:T(1,128)}', space=vmem, size = 0x12000, scoped, tag = 'internal scratch']
  %s0 = inlined_call_operand.hbm [shape: f32[2,8,128], index: 0, kind: input, shape index: {}]
  %s1 = inlined_call_operand.hbm [shape: f32[8,8], index: 1, kind: input, shape index: {}]
  %s2 = inlined_call_operand.hbm [shape: f32[1,128], index: 2, kind: input, shape index: {}]
  %s3 = inlined_call_operand.hbm [shape: f32[1,128], index: 3, kind: input, shape index: {}]
  %s4 = inlined_call_operand.hbm [shape: bf16[128,384], index: 4, kind: input, shape index: {}]
  %s5 = inlined_call_operand.hbm [shape: bf16[128,128], index: 5, kind: input, shape index: {}]
  %s6 = inlined_call_operand.hbm [shape: f32[1,128], index: 6, kind: input, shape index: {}]
  %s7 = inlined_call_operand.hbm [shape: f32[1,128], index: 7, kind: input, shape index: {}]
  %s8 = inlined_call_operand.hbm [shape: f32[1,128], index: 8, kind: input, shape index: {}]
  %s9 = inlined_call_operand.hbm [shape: bf16[128,512], index: 9, kind: input, shape index: {}]
  %s10 = inlined_call_operand.hbm [shape: f32[1,512], index: 10, kind: input, shape index: {}]
  %s11 = inlined_call_operand.hbm [shape: bf16[512,128], index: 11, kind: input, shape index: {}]
  %s12 = inlined_call_operand.hbm [shape: f32[1,128], index: 12, kind: input, shape index: {}]
  %s13 = inlined_call_operand.hbm [shape: f32[2,8,128], index: 13, kind: output, shape index: {}]
  %s14 = sld [smem:[#allocation0]]
  $region137: #{tpu_custom_call.1} parent=0
    _
  %s16 = ssub.s32 1, %s14
  %s17 = scalar_select 0, %s16, %s14
  $region1: #{tpu_custom_call.1} parent=0
    #allocation2 [shape = 'u8[8192]{0}', space=vmem, size = 0x2000, scoped, tag = 'input window, operand 0']
    #allocation3 [shape = 's32[2]{0}', space=sflag, size = 0x8, scoped, tag = 'scoped memory for tpu_custom_call.1']
    #allocation4 [shape = 's32[2]{0}', space=sflag, size = 0x8, scoped, tag = 'scoped memory for tpu_custom_call.1']
    #allocation5 [shape = 'u8[4096]{0}', space=vmem, size = 0x1000, scoped, tag = 'input window, operand 1, single buffered']
    #allocation6 [shape = 's32[1]{0}', space=sflag, size = 0x4, scoped, tag = 'scoped memory for tpu_custom_call.1']
    #allocation7 [shape = 'u8[512]{0}', space=vmem, size = 0x400, scoped, tag = 'input window, operand 2, single buffered']
    #allocation8 [shape = 'u8[512]{0}', space=vmem, size = 0x400, scoped, tag = 'input window, operand 3, single buffered']
    #allocation9 [shape = 's32[1]{0}', space=sflag, size = 0x4, scoped, tag = 'scoped memory for tpu_custom_call.1']
    #allocation10 [shape = 'u8[98304]{0}', space=vmem, size = 0x18000, scoped, tag = 'input window, operand 4, single buffered']
    #allocation11 [shape = 'u8[32768]{0}', space=vmem, size = 0x8000, scoped, tag = 'input window, operand 5, single buffered']
    #allocation12 [shape = 's32[1]{0}', space=sflag, size = 0x4, scoped, tag = 'scoped memory for tpu_custom_call.1']
    #allocation13 [shape = 'u8[512]{0}', space=vmem, size = 0x400, scoped, tag = 'input window, operand 6, single buffered']
    #allocation14 [shape = 'u8[512]{0}', space=vmem, size = 0x400, scoped, tag = 'input window, operand 7, single buffered']
    #allocation15 [shape = 's32[1]{0}', space=sflag, size = 0x4, scoped, tag = 'scoped memory for tpu_custom_call.1']
    #allocation16 [shape = 'u8[512]{0}', space=vmem, size = 0x400, scoped, tag = 'input window, operand 8, single buffered']
    #allocation17 [shape = 'u8[131072]{0}', space=vmem, size = 0x20000, scoped, tag = 'input window, operand 9, single buffered']
    #allocation18 [shape = 's32[1]{0}', space=sflag, size = 0x4, scoped, tag = 'scoped memory for tpu_custom_call.1']
    #allocation19 [shape = 'u8[2048]{0}', space=vmem, size = 0x800, scoped, tag = 'input window, operand 10, single buffered']
    #allocation20 [shape = 'u8[131072]{0}', space=vmem, size = 0x20000, scoped, tag = 'input window, operand 11, single buffered']
    #allocation21 [shape = 's32[1]{0}', space=sflag, size = 0x4, scoped, tag = 'scoped memory for tpu_custom_call.1']
    #allocation22 [shape = 'u8[512]{0}', space=vmem, size = 0x400, scoped, tag = 'input window, operand 12, single buffered']
    #allocation23 [shape = 'u8[8192]{0}', space=vmem, size = 0x2000, scoped, tag = 'output window, operand 0']
    %18 = vsyncpa [#allocation3], 0
    %s19 = scalar_lea.sflag [#allocation3], 1
    %20 = vsyncpa %s19, 0
    %21 = vsyncpa [#allocation6], 0
    %22 = vsyncpa [#allocation9], 0
    %23 = vsyncpa [#allocation12], 0
    %24 = vsyncpa [#allocation15], 0
    %25 = vsyncpa [#allocation18], 0
    %26 = vsyncpa [#allocation21], 0
    %27 = vsyncpa [#allocation4], 0
    %s28 = scalar_lea.sflag [#allocation4], 1
    %29 = vsyncpa %s28, 0
    loop: start=0, step=1, limit=4
    $region2: #{tpu_custom_call.1} parent=1 // loop_pre_header
      _
    $region3: #{tpu_custom_call.1} parent=1 // loop_header
      %s31 = sphi 0, %s35
      %p32 = scmp.ge.s32.totalorder %s31, 4
      %s41 = sphi 0, %s43
      %s44 = sphi 0, %s41
      %s45 = sphi 0, %s44
      %s61 = sphi 0, %s45
      %s65 = sphi 0, %s65
      %s67 = sphi 0, %s65
      %s68 = sphi 0, %s67
      %s82 = sphi 0, %s68
      %s86 = sphi 0, %s86
      %s88 = sphi 0, %s86
      %s89 = sphi 0, %s88
      %s103 = sphi 0, %s89
      %s107 = sphi 0, %s107
      %s109 = sphi 0, %s107
      %s110 = sphi 0, %s109
      %s124 = sphi 0, %s110
      %s128 = sphi 0, %s128
      %s130 = sphi 0, %s128
      %s131 = sphi 0, %s130
      %s145 = sphi 0, %s131
      %s149 = sphi 0, %s149
      %s151 = sphi 0, %s149
      %s152 = sphi 0, %s151
      %s166 = sphi 0, %s152
      %s170 = sphi 0, %s170
      %s172 = sphi 0, %s170
      %s173 = sphi 0, %s172
      %s187 = sphi 0, %s173
      %s191 = sphi 0, %s191
      %s193 = sphi 0, %s191
      %s194 = sphi 0, %s193
      %s208 = sphi 0, %s194
      %s212 = sphi 0, %s212
      %s214 = sphi 0, %s212
      %s215 = sphi 0, %s214
      %s229 = sphi 0, %s215
      %s233 = sphi 0, %s233
      %s235 = sphi 0, %s233
      %s236 = sphi 0, %s235
      %s250 = sphi 0, %s236
      %s254 = sphi 0, %s254
      %s256 = sphi 0, %s254
      %s257 = sphi 0, %s256
      %s271 = sphi 0, %s257
      %s275 = sphi 0, %s275
      %s277 = sphi 0, %s275
      %s278 = sphi 0, %s277
      %s292 = sphi 0, %s278
      %s296 = sphi 0, %s296
      %s298 = sphi 0, %s296
      %s299 = sphi 0, %s298
      %s313 = sphi 0, %s299
      %s319 = sphi 0, %s321
      %s322 = sphi 0, %s319
      %s323 = sphi 0, %s322
      %s339 = sphi 0, %s323
    $region4: #{tpu_custom_call.1} parent=1 // loop_header_branch
      %34 = sbr.rel (%p32) target = $region8
    $region5: #{tpu_custom_call.1} parent=1 // loop_body
      %s36 = ssub.s32 %s31, 1
      %s37 = ssub.s32 %s31, 2
      %s38 = sadd.s32 %s31, 1
      %s39 = ssub.s32 %s31, %s38
      %p40 = scmp.eq.s32.totalorder %s39, 0
      %s42 = sadd.s32 %s41, 1
      %s43 = scalar_select %p40, %s41, %s42
      %p46 = pneg %p40
      %p47 = scmp.eq.s32.totalorder %s31, 1
      %p48 = por %p46, %p47
      %p49 = scmp.ne.s32.totalorder %s41, %s44
      %p50 = scmp.eq.s32.totalorder %s31, 0
      %p51 = por %p49, %p50
      %p52 = scmp.ne.s32.totalorder %s41, %s44
      %p53 = scmp.eq.s32.totalorder %s36, 1
      %p54 = por %p52, %p53
      %p55 = scmp.ne.s32.totalorder %s44, %s45
      %p56 = scmp.eq.s32.totalorder %s36, 0
      %p57 = por %p55, %p56
      %p58 = scmp.ne.s32.totalorder %s44, %s45
      %p59 = scmp.eq.s32.totalorder %s37, 1
      %p60 = por %p58, %p59
      %p62 = scmp.ne.s32.totalorder %s45, %s61
      %p63 = scmp.eq.s32.totalorder %s37, 0
      %p64 = por %p62, %p63
      %s66 = sadd.s32 %s65, 1
      %p69 = scmp.eq.s32.totalorder %s31, 1
      %p70 = scmp.ne.s32.totalorder %s65, %s67
      %p71 = scmp.eq.s32.totalorder %s31, 0
      %p72 = por %p70, %p71
      %p73 = scmp.ne.s32.totalorder %s65, %s67
      %p74 = scmp.eq.s32.totalorder %s36, 1
      %p75 = por %p73, %p74
      %p76 = scmp.ne.s32.totalorder %s67, %s68
      %p77 = scmp.eq.s32.totalorder %s36, 0
      %p78 = por %p76, %p77
      %p79 = scmp.ne.s32.totalorder %s67, %s68
      %p80 = scmp.eq.s32.totalorder %s37, 1
      %p81 = por %p79, %p80
      %p83 = scmp.ne.s32.totalorder %s68, %s82
      %p84 = scmp.eq.s32.totalorder %s37, 0
      %p85 = por %p83, %p84
      %s87 = sadd.s32 %s86, 1
      %p90 = scmp.eq.s32.totalorder %s31, 1
      %p91 = scmp.ne.s32.totalorder %s86, %s88
      %p92 = scmp.eq.s32.totalorder %s31, 0
      %p93 = por %p91, %p92
      %p94 = scmp.ne.s32.totalorder %s86, %s88
      %p95 = scmp.eq.s32.totalorder %s36, 1
      %p96 = por %p94, %p95
      %p97 = scmp.ne.s32.totalorder %s88, %s89
      %p98 = scmp.eq.s32.totalorder %s36, 0
      %p99 = por %p97, %p98
      %p100 = scmp.ne.s32.totalorder %s88, %s89
      %p101 = scmp.eq.s32.totalorder %s37, 1
      %p102 = por %p100, %p101
      %p104 = scmp.ne.s32.totalorder %s89, %s103
      %p105 = scmp.eq.s32.totalorder %s37, 0
      %p106 = por %p104, %p105
      %s108 = sadd.s32 %s107, 1
      %p111 = scmp.eq.s32.totalorder %s31, 1
      %p112 = scmp.ne.s32.totalorder %s107, %s109
      %p113 = scmp.eq.s32.totalorder %s31, 0
      %p114 = por %p112, %p113
      %p115 = scmp.ne.s32.totalorder %s107, %s109
      %p116 = scmp.eq.s32.totalorder %s36, 1
      %p117 = por %p115, %p116
      %p118 = scmp.ne.s32.totalorder %s109, %s110
      %p119 = scmp.eq.s32.totalorder %s36, 0
      %p120 = por %p118, %p119
      %p121 = scmp.ne.s32.totalorder %s109, %s110
      %p122 = scmp.eq.s32.totalorder %s37, 1
      %p123 = por %p121, %p122
      %p125 = scmp.ne.s32.totalorder %s110, %s124
      %p126 = scmp.eq.s32.totalorder %s37, 0
      %p127 = por %p125, %p126
      %s129 = sadd.s32 %s128, 1
      %p132 = scmp.eq.s32.totalorder %s31, 1
      %p133 = scmp.ne.s32.totalorder %s128, %s130
      %p134 = scmp.eq.s32.totalorder %s31, 0
      %p135 = por %p133, %p134
      %p136 = scmp.ne.s32.totalorder %s128, %s130
      %p137 = scmp.eq.s32.totalorder %s36, 1
      %p138 = por %p136, %p137
      %p139 = scmp.ne.s32.totalorder %s130, %s131
      %p140 = scmp.eq.s32.totalorder %s36, 0
      %p141 = por %p139, %p140
      %p142 = scmp.ne.s32.totalorder %s130, %s131
      %p143 = scmp.eq.s32.totalorder %s37, 1
      %p144 = por %p142, %p143
      %p146 = scmp.ne.s32.totalorder %s131, %s145
      %p147 = scmp.eq.s32.totalorder %s37, 0
      %p148 = por %p146, %p147
      %s150 = sadd.s32 %s149, 1
      %p153 = scmp.eq.s32.totalorder %s31, 1
      %p154 = scmp.ne.s32.totalorder %s149, %s151
      %p155 = scmp.eq.s32.totalorder %s31, 0
      %p156 = por %p154, %p155
      %p157 = scmp.ne.s32.totalorder %s149, %s151
      %p158 = scmp.eq.s32.totalorder %s36, 1
      %p159 = por %p157, %p158
      %p160 = scmp.ne.s32.totalorder %s151, %s152
      %p161 = scmp.eq.s32.totalorder %s36, 0
      %p162 = por %p160, %p161
      %p163 = scmp.ne.s32.totalorder %s151, %s152
      %p164 = scmp.eq.s32.totalorder %s37, 1
      %p165 = por %p163, %p164
      %p167 = scmp.ne.s32.totalorder %s152, %s166
      %p168 = scmp.eq.s32.totalorder %s37, 0
      %p169 = por %p167, %p168
      %s171 = sadd.s32 %s170, 1
      %p174 = scmp.eq.s32.totalorder %s31, 1
      %p175 = scmp.ne.s32.totalorder %s170, %s172
      %p176 = scmp.eq.s32.totalorder %s31, 0
      %p177 = por %p175, %p176
      %p178 = scmp.ne.s32.totalorder %s170, %s172
      %p179 = scmp.eq.s32.totalorder %s36, 1
      %p180 = por %p178, %p179
      %p181 = scmp.ne.s32.totalorder %s172, %s173
      %p182 = scmp.eq.s32.totalorder %s36, 0
      %p183 = por %p181, %p182
      %p184 = scmp.ne.s32.totalorder %s172, %s173
      %p185 = scmp.eq.s32.totalorder %s37, 1
      %p186 = por %p184, %p185
      %p188 = scmp.ne.s32.totalorder %s173, %s187
      %p189 = scmp.eq.s32.totalorder %s37, 0
      %p190 = por %p188, %p189
      %s192 = sadd.s32 %s191, 1
      %p195 = scmp.eq.s32.totalorder %s31, 1
      %p196 = scmp.ne.s32.totalorder %s191, %s193
      %p197 = scmp.eq.s32.totalorder %s31, 0
      %p198 = por %p196, %p197
      %p199 = scmp.ne.s32.totalorder %s191, %s193
      %p200 = scmp.eq.s32.totalorder %s36, 1
      %p201 = por %p199, %p200
      %p202 = scmp.ne.s32.totalorder %s193, %s194
      %p203 = scmp.eq.s32.totalorder %s36, 0
      %p204 = por %p202, %p203
      %p205 = scmp.ne.s32.totalorder %s193, %s194
      %p206 = scmp.eq.s32.totalorder %s37, 1
      %p207 = por %p205, %p206
      %p209 = scmp.ne.s32.totalorder %s194, %s208
      %p210 = scmp.eq.s32.totalorder %s37, 0
      %p211 = por %p209, %p210
      %s213 = sadd.s32 %s212, 1
      %p216 = scmp.eq.s32.totalorder %s31, 1
      %p217 = scmp.ne.s32.totalorder %s212, %s214
      %p218 = scmp.eq.s32.totalorder %s31, 0
      %p219 = por %p217, %p218
      %p220 = scmp.ne.s32.totalorder %s212, %s214
      %p221 = scmp.eq.s32.totalorder %s36, 1
      %p222 = por %p220, %p221
      %p223 = scmp.ne.s32.totalorder %s214, %s215
      %p224 = scmp.eq.s32.totalorder %s36, 0
      %p225 = por %p223, %p224
      %p226 = scmp.ne.s32.totalorder %s214, %s215
      %p227 = scmp.eq.s32.totalorder %s37, 1
      %p228 = por %p226, %p227
      %p230 = scmp.ne.s32.totalorder %s215, %s229
      %p231 = scmp.eq.s32.totalorder %s37, 0
      %p232 = por %p230, %p231
      %s234 = sadd.s32 %s233, 1
      %p237 = scmp.eq.s32.totalorder %s31, 1
      %p238 = scmp.ne.s32.totalorder %s233, %s235
      %p239 = scmp.eq.s32.totalorder %s31, 0
      %p240 = por %p238, %p239
      %p241 = scmp.ne.s32.totalorder %s233, %s235
      %p242 = scmp.eq.s32.totalorder %s36, 1
      %p243 = por %p241, %p242
      %p244 = scmp.ne.s32.totalorder %s235, %s236
      %p245 = scmp.eq.s32.totalorder %s36, 0
      %p246 = por %p244, %p245
      %p247 = scmp.ne.s32.totalorder %s235, %s236
      %p248 = scmp.eq.s32.totalorder %s37, 1
      %p249 = por %p247, %p248
      %p251 = scmp.ne.s32.totalorder %s236, %s250
      %p252 = scmp.eq.s32.totalorder %s37, 0
      %p253 = por %p251, %p252
      %s255 = sadd.s32 %s254, 1
      %p258 = scmp.eq.s32.totalorder %s31, 1
      %p259 = scmp.ne.s32.totalorder %s254, %s256
      %p260 = scmp.eq.s32.totalorder %s31, 0
      %p261 = por %p259, %p260
      %p262 = scmp.ne.s32.totalorder %s254, %s256
      %p263 = scmp.eq.s32.totalorder %s36, 1
      %p264 = por %p262, %p263
      %p265 = scmp.ne.s32.totalorder %s256, %s257
      %p266 = scmp.eq.s32.totalorder %s36, 0
      %p267 = por %p265, %p266
      %p268 = scmp.ne.s32.totalorder %s256, %s257
      %p269 = scmp.eq.s32.totalorder %s37, 1
      %p270 = por %p268, %p269
      %p272 = scmp.ne.s32.totalorder %s257, %s271
      %p273 = scmp.eq.s32.totalorder %s37, 0
      %p274 = por %p272, %p273
      %s276 = sadd.s32 %s275, 1
      %p279 = scmp.eq.s32.totalorder %s31, 1
      %p280 = scmp.ne.s32.totalorder %s275, %s277
      %p281 = scmp.eq.s32.totalorder %s31, 0
      %p282 = por %p280, %p281
      %p283 = scmp.ne.s32.totalorder %s275, %s277
      %p284 = scmp.eq.s32.totalorder %s36, 1
      %p285 = por %p283, %p284
      %p286 = scmp.ne.s32.totalorder %s277, %s278
      %p287 = scmp.eq.s32.totalorder %s36, 0
      %p288 = por %p286, %p287
      %p289 = scmp.ne.s32.totalorder %s277, %s278
      %p290 = scmp.eq.s32.totalorder %s37, 1
      %p291 = por %p289, %p290
      %p293 = scmp.ne.s32.totalorder %s278, %s292
      %p294 = scmp.eq.s32.totalorder %s37, 0
      %p295 = por %p293, %p294
      %s297 = sadd.s32 %s296, 1
      %p300 = scmp.eq.s32.totalorder %s31, 1
      %p301 = scmp.ne.s32.totalorder %s296, %s298
      %p302 = scmp.eq.s32.totalorder %s31, 0
      %p303 = por %p301, %p302
      %p304 = scmp.ne.s32.totalorder %s296, %s298
      %p305 = scmp.eq.s32.totalorder %s36, 1
      %p306 = por %p304, %p305
      %p307 = scmp.ne.s32.totalorder %s298, %s299
      %p308 = scmp.eq.s32.totalorder %s36, 0
      %p309 = por %p307, %p308
      %p310 = scmp.ne.s32.totalorder %s298, %s299
      %p311 = scmp.eq.s32.totalorder %s37, 1
      %p312 = por %p310, %p311
      %p314 = scmp.ne.s32.totalorder %s299, %s313
      %p315 = scmp.eq.s32.totalorder %s37, 0
      %p316 = por %p314, %p315
      %s317 = ssub.s32 %s31, %s38
      %p318 = scmp.eq.s32.totalorder %s317, 0
      %s320 = sadd.s32 %s319, 1
      %s321 = scalar_select %p318, %s319, %s320
      %p324 = pneg %p318
      %p325 = scmp.eq.s32.totalorder %s31, 1
      %p326 = por %p324, %p325
      %p327 = scmp.ne.s32.totalorder %s319, %s322
      %p328 = scmp.eq.s32.totalorder %s31, 0
      %p329 = por %p327, %p328
      %p330 = scmp.ne.s32.totalorder %s319, %s322
      %p331 = scmp.eq.s32.totalorder %s36, 1
      %p332 = por %p330, %p331
      %p333 = scmp.ne.s32.totalorder %s322, %s323
      %p334 = scmp.eq.s32.totalorder %s36, 0
      %p335 = por %p333, %p334
      %p336 = scmp.ne.s32.totalorder %s322, %s323
      %p337 = scmp.eq.s32.totalorder %s37, 1
      %p338 = por %p336, %p337
      %p340 = scmp.ne.s32.totalorder %s323, %s339
      %p341 = scmp.eq.s32.totalorder %s37, 0
      %p342 = por %p340, %p341
      %p343 = scmp.le.s32.totalorder 1, %s31
      %p344 = scmp.lt.s32.totalorder %s31, 3
      %p345 = pnand %p343, %p344
      %p346 = pneg %p345
      // Predicated region
      $region9: #{tpu_custom_call.1} parent=5 // pred_check
        _
      $region10: #{tpu_custom_call.1} parent=5 // pred_check_branch
        %348 = sbr.rel (%p345) target = $region12
      $region11: #{tpu_custom_call.1} parent=5 // pred_region
        %s349 = ssub.s32 %s31, 1
        // Predicated region
        $region13: #{tpu_custom_call.1} parent=11 // pred_check
          %p350 = pneg %p78
        $region14: #{tpu_custom_call.1} parent=11 // pred_check_branch
          %352 = sbr.rel (%p350) target = $region16
        $region15: #{tpu_custom_call.1} parent=11 // pred_region
          %s354 = ssub.s32 128, 128
          %355 = vsyncadd [#allocation6], %s354
          %s357 = sshll.u32 [#allocation5], 4
          %s358 = int_to_ptr.vmem [resolvable:$true] %s357
          %360 = dma.hbm_to_vmem [thread:$0]  %s1, 128, %s358, [#allocation6]
        $region16: #{tpu_custom_call.1} parent=11 // pred_fallthru
          _
        // Predicated region
        $region17: #{tpu_custom_call.1} parent=11 // pred_check
          %p361 = pneg %p99
        $region18: #{tpu_custom_call.1} parent=11 // pred_check_branch
          %363 = sbr.rel (%p361) target = $region20
        $region19: #{tpu_custom_call.1} parent=11 // pred_region
          %s365 = ssub.s32 16, 16
          %366 = vsyncadd [#allocation6], %s365
          %s368 = sshll.u32 [#allocation7], 4
          %s369 = int_to_ptr.vmem [resolvable:$true] %s368
          %371 = dma.hbm_to_vmem [thread:$0]  %s2, 16, %s369, [#allocation6]
        $region20: #{tpu_custom_call.1} parent=11 // pred_fallthru
          _
        // Predicated region
        $region21: #{tpu_custom_call.1} parent=11 // pred_check
          %p372 = pneg %p120
        $region22: #{tpu_custom_call.1} parent=11 // pred_check_branch
          %374 = sbr.rel (%p372) target = $region24
        $region23: #{tpu_custom_call.1} parent=11 // pred_region
          %s376 = ssub.s32 16, 16
          %377 = vsyncadd [#allocation9], %s376
          %s379 = sshll.u32 [#allocation8], 4
          %s380 = int_to_ptr.vmem [resolvable:$true] %s379
          %382 = dma.hbm_to_vmem [thread:$0]  %s3, 16, %s380, [#allocation9]
        $region24: #{tpu_custom_call.1} parent=11 // pred_fallthru
          _
        // Predicated region
        $region25: #{tpu_custom_call.1} parent=11 // pred_check
          %p383 = pneg %p141
        $region26: #{tpu_custom_call.1} parent=11 // pred_check_branch
          %385 = sbr.rel (%p383) target = $region28
        $region27: #{tpu_custom_call.1} parent=11 // pred_region
          %s387 = ssub.s32 3072, 3072
          %388 = vsyncadd [#allocation9], %s387
          %s389 = sshll.u32 [#allocation10], 4
          %s390 = int_to_ptr.vmem [resolvable:$true] %s389
          %395 = dma.hbm_to_vmem [thread:$0]  %s4, 3072, %s390, [#allocation9], 192, 192, 12
        $region28: #{tpu_custom_call.1} parent=11 // pred_fallthru
          _
        // Predicated region
        $region29: #{tpu_custom_call.1} parent=11 // pred_check
          %p396 = pneg %p162
        $region30: #{tpu_custom_call.1} parent=11 // pred_check_branch
          %398 = sbr.rel (%p396) target = $region32
        $region31: #{tpu_custom_call.1} parent=11 // pred_region
          %s400 = ssub.s32 1024, 1024
          %401 = vsyncadd [#allocation12], %s400
          %s402 = sshll.u32 [#allocation11], 4
          %s403 = int_to_ptr.vmem [resolvable:$true] %s402
          %408 = dma.hbm_to_vmem [thread:$0]  %s5, 1024, %s403, [#allocation12], 64, 64, 4
        $region32: #{tpu_custom_call.1} parent=11 // pred_fallthru
          _
        // Predicated region
        $region33: #{tpu_custom_call.1} parent=11 // pred_check
          %p409 = pneg %p183
        $region34: #{tpu_custom_call.1} parent=11 // pred_check_branch
          %411 = sbr.rel (%p409) target = $region36
        $region35: #{tpu_custom_call.1} parent=11 // pred_region
          %s413 = ssub.s32 16, 16
          %414 = vsyncadd [#allocation12], %s413
          %s416 = sshll.u32 [#allocation13], 4
          %s417 = int_to_ptr.vmem [resolvable:$true] %s416
          %419 = dma.hbm_to_vmem [thread:$0]  %s6, 16, %s417, [#allocation12]
        $region36: #{tpu_custom_call.1} parent=11 // pred_fallthru
          _
        // Predicated region
        $region37: #{tpu_custom_call.1} parent=11 // pred_check
          %p420 = pneg %p204
        $region38: #{tpu_custom_call.1} parent=11 // pred_check_branch
          %422 = sbr.rel (%p420) target = $region40
        $region39: #{tpu_custom_call.1} parent=11 // pred_region
          %s424 = ssub.s32 16, 16
          %425 = vsyncadd [#allocation15], %s424
          %s427 = sshll.u32 [#allocation14], 4
          %s428 = int_to_ptr.vmem [resolvable:$true] %s427
          %430 = dma.hbm_to_vmem [thread:$0]  %s7, 16, %s428, [#allocation15]
        $region40: #{tpu_custom_call.1} parent=11 // pred_fallthru
          _
        // Predicated region
        $region41: #{tpu_custom_call.1} parent=11 // pred_check
          %p431 = pneg %p225
        $region42: #{tpu_custom_call.1} parent=11 // pred_check_branch
          %433 = sbr.rel (%p431) target = $region44
        $region43: #{tpu_custom_call.1} parent=11 // pred_region
          %s435 = ssub.s32 16, 16
          %436 = vsyncadd [#allocation15], %s435
          %s438 = sshll.u32 [#allocation16], 4
          %s439 = int_to_ptr.vmem [resolvable:$true] %s438
          %441 = dma.hbm_to_vmem [thread:$0]  %s8, 16, %s439, [#allocation15]
        $region44: #{tpu_custom_call.1} parent=11 // pred_fallthru
          _
        // Predicated region
        $region45: #{tpu_custom_call.1} parent=11 // pred_check
          %p442 = pneg %p246
        $region46: #{tpu_custom_call.1} parent=11 // pred_check_branch
          %444 = sbr.rel (%p442) target = $region48
        $region47: #{tpu_custom_call.1} parent=11 // pred_region
          %s446 = ssub.s32 4096, 4096
          %447 = vsyncadd [#allocation18], %s446
          %s448 = sshll.u32 [#allocation17], 4
          %s449 = int_to_ptr.vmem [resolvable:$true] %s448
          %454 = dma.hbm_to_vmem [thread:$0]  %s9, 4096, %s449, [#allocation18], 256, 256, 16
        $region48: #{tpu_custom_call.1} parent=11 // pred_fallthru
          _
        // Predicated region
        $region49: #{tpu_custom_call.1} parent=11 // pred_check
          %p455 = pneg %p267
        $region50: #{tpu_custom_call.1} parent=11 // pred_check_branch
          %457 = sbr.rel (%p455) target = $region52
        $region51: #{tpu_custom_call.1} parent=11 // pred_region
          %s459 = ssub.s32 64, 64
          %460 = vsyncadd [#allocation18], %s459
          %s462 = sshll.u32 [#allocation19], 4
          %s463 = int_to_ptr.vmem [resolvable:$true] %s462
          %465 = dma.hbm_to_vmem [thread:$0]  %s10, 64, %s463, [#allocation18]
        $region52: #{tpu_custom_call.1} parent=11 // pred_fallthru
          _
        // Predicated region
        $region53: #{tpu_custom_call.1} parent=11 // pred_check
          %p466 = pneg %p288
        $region54: #{tpu_custom_call.1} parent=11 // pred_check_branch
          %468 = sbr.rel (%p466) target = $region56
        $region55: #{tpu_custom_call.1} parent=11 // pred_region
          %s470 = ssub.s32 4096, 4096
          %471 = vsyncadd [#allocation21], %s470
          %s472 = sshll.u32 [#allocation20], 4
          %s473 = int_to_ptr.vmem [resolvable:$true] %s472
          %478 = dma.hbm_to_vmem [thread:$0]  %s11, 4096, %s473, [#allocation21], 64, 64, 4
        $region56: #{tpu_custom_call.1} parent=11 // pred_fallthru
          _
        // Predicated region
        $region57: #{tpu_custom_call.1} parent=11 // pred_check
          %p479 = pneg %p309
        $region58: #{tpu_custom_call.1} parent=11 // pred_check_branch
          %481 = sbr.rel (%p479) target = $region60
        $region59: #{tpu_custom_call.1} parent=11 // pred_region
          %s483 = ssub.s32 16, 16
          %484 = vsyncadd [#allocation21], %s483
          %s486 = sshll.u32 [#allocation22], 4
          %s487 = int_to_ptr.vmem [resolvable:$true] %s486
          %489 = dma.hbm_to_vmem [thread:$0]  %s12, 16, %s487, [#allocation21]
        $region60: #{tpu_custom_call.1} parent=11 // pred_fallthru
          _
      $region12: #{tpu_custom_call.1} parent=5 // pred_fallthru
        _
      %p490 = scmp.lt.s32.totalorder %s31, 2
      // Predicated region
      $region61: #{tpu_custom_call.1} parent=5 // pred_check
        %p491 = pneg %p490
      $region62: #{tpu_custom_call.1} parent=5 // pred_check_branch
        %493 = sbr.rel (%p491) target = $region64
      $region63: #{tpu_custom_call.1} parent=5 // pred_region
        // Predicated region
        $region65: #{tpu_custom_call.1} parent=63 // pred_check
          %p494 = pneg %p51
        $region66: #{tpu_custom_call.1} parent=63 // pred_check_branch
          %496 = sbr.rel (%p494) target = $region68
        $region67: #{tpu_custom_call.1} parent=63 // pred_region
          %s497 = sand.u32 %s41, 1
          %s498 = scalar_lea.sflag [#allocation3], %s497
          %s499 = sand.u32 %s41, 1
          %s500 = smul.addr %s499, 8
          %s501 = scalar_lea.vmem [#allocation2], %s500
          %s503 = ssub.s32 128, 128
          %504 = vsyncadd %s498, %s503
          %s505 = smul.addr %s31, 128
          %s506 = scalar_lea.hbm %s0, %s505
          %s508 = sshll.u32 %s501, 4
          %s509 = int_to_ptr.vmem [resolvable:$true] %s508
          %511 = dma.hbm_to_vmem [thread:$0]  %s506, 128, %s509, %s498
        $region68: #{tpu_custom_call.1} parent=63 // pred_fallthru
          _
      $region64: #{tpu_custom_call.1} parent=5 // pred_fallthru
        _
      %p512 = scmp.le.s32.totalorder 1, %s31
      %p513 = scmp.lt.s32.totalorder %s31, 3
      %p514 = pnand %p512, %p513
      %p515 = pneg %p514
      // Predicated region
      $region69: #{tpu_custom_call.1} parent=5 // pred_check
        _
      $region70: #{tpu_custom_call.1} parent=5 // pred_check_branch
        %517 = sbr.rel (%p514) target = $region72
      $region71: #{tpu_custom_call.1} parent=5 // pred_region
        %s518 = ssub.s32 %s31, 1
        %s519 = sand.u32 %s44, 1
        %s520 = scalar_lea.sflag [#allocation3], %s519
        %s521 = sand.u32 %s44, 1
        %s522 = smul.addr %s521, 8
        %s523 = scalar_lea.vmem [#allocation2], %s522
        // Predicated region
        $region73: #{tpu_custom_call.1} parent=71 // pred_check
          %p524 = pneg %p57
        $region74: #{tpu_custom_call.1} parent=71 // pred_check_branch
          %526 = sbr.rel (%p524) target = $region76
        $region75: #{tpu_custom_call.1} parent=71 // pred_region
          %527 = dma.done %s520, 128
        $region76: #{tpu_custom_call.1} parent=71 // pred_fallthru
          _
        // Predicated region
        $region77: #{tpu_custom_call.1} parent=71 // pred_check
          %p528 = pneg %p78
        $region78: #{tpu_custom_call.1} parent=71 // pred_check_branch
          %530 = sbr.rel (%p528) target = $region80
        $region79: #{tpu_custom_call.1} parent=71 // pred_region
          %531 = dma.done [#allocation6], 128
        $region80: #{tpu_custom_call.1} parent=71 // pred_fallthru
          _
        // Predicated region
        $region81: #{tpu_custom_call.1} parent=71 // pred_check
          %p532 = pneg %p99
        $region82: #{tpu_custom_call.1} parent=71 // pred_check_branch
          %534 = sbr.rel (%p532) target = $region84
        $region83: #{tpu_custom_call.1} parent=71 // pred_region
          %535 = dma.done [#allocation6], 16
        $region84: #{tpu_custom_call.1} parent=71 // pred_fallthru
          _
        // Predicated region
        $region85: #{tpu_custom_call.1} parent=71 // pred_check
          %p536 = pneg %p120
        $region86: #{tpu_custom_call.1} parent=71 // pred_check_branch
          %538 = sbr.rel (%p536) target = $region88
        $region87: #{tpu_custom_call.1} parent=71 // pred_region
          %539 = dma.done [#allocation9], 16
        $region88: #{tpu_custom_call.1} parent=71 // pred_fallthru
          _
        // Predicated region
        $region89: #{tpu_custom_call.1} parent=71 // pred_check
          %p540 = pneg %p141
        $region90: #{tpu_custom_call.1} parent=71 // pred_check_branch
          %542 = sbr.rel (%p540) target = $region92
        $region91: #{tpu_custom_call.1} parent=71 // pred_region
          %543 = dma.done [#allocation9], 3072
        $region92: #{tpu_custom_call.1} parent=71 // pred_fallthru
          _
        // Predicated region
        $region93: #{tpu_custom_call.1} parent=71 // pred_check
          %p544 = pneg %p162
        $region94: #{tpu_custom_call.1} parent=71 // pred_check_branch
          %546 = sbr.rel (%p544) target = $region96
        $region95: #{tpu_custom_call.1} parent=71 // pred_region
          %547 = dma.done [#allocation12], 1024
        $region96: #{tpu_custom_call.1} parent=71 // pred_fallthru
          _
        // Predicated region
        $region97: #{tpu_custom_call.1} parent=71 // pred_check
          %p548 = pneg %p183
        $region98: #{tpu_custom_call.1} parent=71 // pred_check_branch
          %550 = sbr.rel (%p548) target = $region100
        $region99: #{tpu_custom_call.1} parent=71 // pred_region
          %551 = dma.done [#allocation12], 16
        $region100: #{tpu_custom_call.1} parent=71 // pred_fallthru
          _
        // Predicated region
        $region101: #{tpu_custom_call.1} parent=71 // pred_check
          %p552 = pneg %p204
        $region102: #{tpu_custom_call.1} parent=71 // pred_check_branch
          %554 = sbr.rel (%p552) target = $region104
        $region103: #{tpu_custom_call.1} parent=71 // pred_region
          %555 = dma.done [#allocation15], 16
        $region104: #{tpu_custom_call.1} parent=71 // pred_fallthru
          _
        // Predicated region
        $region105: #{tpu_custom_call.1} parent=71 // pred_check
          %p556 = pneg %p225
        $region106: #{tpu_custom_call.1} parent=71 // pred_check_branch
          %558 = sbr.rel (%p556) target = $region108
        $region107: #{tpu_custom_call.1} parent=71 // pred_region
          %559 = dma.done [#allocation15], 16
        $region108: #{tpu_custom_call.1} parent=71 // pred_fallthru
          _
        // Predicated region
        $region109: #{tpu_custom_call.1} parent=71 // pred_check
          %p560 = pneg %p246
        $region110: #{tpu_custom_call.1} parent=71 // pred_check_branch
          %562 = sbr.rel (%p560) target = $region112
        $region111: #{tpu_custom_call.1} parent=71 // pred_region
          %563 = dma.done [#allocation18], 4096
        $region112: #{tpu_custom_call.1} parent=71 // pred_fallthru
          _
        // Predicated region
        $region113: #{tpu_custom_call.1} parent=71 // pred_check
          %p564 = pneg %p267
        $region114: #{tpu_custom_call.1} parent=71 // pred_check_branch
          %566 = sbr.rel (%p564) target = $region116
        $region115: #{tpu_custom_call.1} parent=71 // pred_region
          %567 = dma.done [#allocation18], 64
        $region116: #{tpu_custom_call.1} parent=71 // pred_fallthru
          _
        // Predicated region
        $region117: #{tpu_custom_call.1} parent=71 // pred_check
          %p568 = pneg %p288
        $region118: #{tpu_custom_call.1} parent=71 // pred_check_branch
          %570 = sbr.rel (%p568) target = $region120
        $region119: #{tpu_custom_call.1} parent=71 // pred_region
          %571 = dma.done [#allocation21], 4096
        $region120: #{tpu_custom_call.1} parent=71 // pred_fallthru
          _
        // Predicated region
        $region121: #{tpu_custom_call.1} parent=71 // pred_check
          %p572 = pneg %p309
        $region122: #{tpu_custom_call.1} parent=71 // pred_check_branch
          %574 = sbr.rel (%p572) target = $region124
        $region123: #{tpu_custom_call.1} parent=71 // pred_region
          %575 = dma.done [#allocation21], 16
        $region124: #{tpu_custom_call.1} parent=71 // pred_fallthru
          _
        %s576 = sand.u32 %s44, 1
        %s577 = scalar_lea.sflag [#allocation3], %s576
        %s578 = sand.u32 %s44, 1
        %s579 = smul.addr %s578, 8
        %s580 = scalar_lea.vmem [#allocation2], %s579
        %p581 = pneg %p57
        %p582 = pneg %p54
        %p583 = pneg %p78
        %p584 = pneg %p75
        %p585 = pneg %p99
        %p586 = pneg %p96
        %p587 = pneg %p120
        %p588 = pneg %p117
        %p589 = pneg %p141
        %p590 = pneg %p138
        %p591 = pneg %p162
        %p592 = pneg %p159
        %p593 = pneg %p183
        %p594 = pneg %p180
        %p595 = pneg %p204
        %p596 = pneg %p201
        %p597 = pneg %p225
        %p598 = pneg %p222
        %p599 = pneg %p246
        %p600 = pneg %p243
        %p601 = pneg %p267
        %p602 = pneg %p264
        %p603 = pneg %p288
        %p604 = pneg %p285
        %p605 = pneg %p309
        %p606 = pneg %p306
        %p607 = pneg %p335
        %p608 = pneg %p332
        %s609 = sand.u32 %s322, 1
        %s610 = scalar_lea.sflag [#allocation4], %s609
        %s611 = sand.u32 %s322, 1
        %s612 = smul.addr %s611, 8
        %s613 = scalar_lea.vmem [#allocation23], %s612
        %v615 = vld [vmem:[%s523] sm:$0xff]
        %v616 = vld [vmem:[#allocation7] sm:$0x1]
        %v617 = vld [vmem:[#allocation8] sm:$0x1]
        %618 = vadd.xlane.f32.xlu0 %v615
        %v619 = vpop.xlane.xlu0 %618
        %v620 = vrcp.pop 128.0
        %v621 = vmul.f32 %v619, %v620
        %v622 = vsub.f32 %v615, %v621
        %v623 = vmul.f32 %v622, %v622
        %624 = vadd.xlane.f32.xlu0 %v623
        %v625 = vpop.xlane.xlu0 %624
        %v626 = vmul.f32 %v625, %v620
        %v627 = vadd.f32 %v626, 1e-05
        %v628 = vrsqrt.pop %v627
        %v629 = vmul.f32 %v622, %v628
        %v631 = vlaneseq
        %v632 = vshrl.u32 %v631, 7
        %v633 = vsub.s32 0, %v632
        %v634 = vrot.slane %v616, %v633
        %v636 = vmul.f32 %v629, %v634
        %v638 = vlaneseq
        %v639 = vshrl.u32 %v638, 7
        %v640 = vsub.s32 0, %v639
        %v641 = vrot.slane %v617, %v640
        %v643 = vadd.f32 %v636, %v641
        %v644 = vpack.c.bf16 %v643, %v643
        %v645 = vld [vmem:[#allocation10] sm:$0xff]
        %v646 = vld [vmem:[#allocation10 + $0x8] sm:$0xf]
        %v647 = vld [vmem:[#allocation10 + $0xc] sm:$0xff]
        %v648 = vld [vmem:[#allocation10 + $0x14] sm:$0xf]
        %v649 = vld [vmem:[#allocation10 + $0x18] sm:$0xff]
        %v650 = vld [vmem:[#allocation10 + $0x20] sm:$0xf]
        %v651 = vld [vmem:[#allocation10 + $0x24] sm:$0xff]
        %v652 = vld [vmem:[#allocation10 + $0x2c] sm:$0xf]
        %v653 = vld [vmem:[#allocation10 + $0x30] sm:$0xff]
        %v654 = vld [vmem:[#allocation10 + $0x38] sm:$0xf]
        %v655 = vld [vmem:[#allocation10 + $0x3c] sm:$0xff]
        %v656 = vld [vmem:[#allocation10 + $0x44] sm:$0xf]
        %v657 = vld [vmem:[#allocation10 + $0x48] sm:$0xff]
        %v658 = vld [vmem:[#allocation10 + $0x50] sm:$0xf]
        %v659 = vld [vmem:[#allocation10 + $0x54] sm:$0xff]
        %v660 = vld [vmem:[#allocation10 + $0x5c] sm:$0xf]
        %v661 = vld [vmem:[#allocation10 + $0x60] sm:$0xff]
        %v662 = vld [vmem:[#allocation10 + $0x68] sm:$0xf]
        %v663 = vld [vmem:[#allocation10 + $0x6c] sm:$0xff]
        %v664 = vld [vmem:[#allocation10 + $0x74] sm:$0xf]
        %v665 = vld [vmem:[#allocation10 + $0x78] sm:$0xff]
        %v666 = vld [vmem:[#allocation10 + $0x80] sm:$0xf]
        %v667 = vld [vmem:[#allocation10 + $0x84] sm:$0xff]
        %v668 = vld [vmem:[#allocation10 + $0x8c] sm:$0xf]
        %v669 = vld [vmem:[#allocation10 + $0x90] sm:$0xff]
        %v670 = vld [vmem:[#allocation10 + $0x98] sm:$0xf]
        %v671 = vld [vmem:[#allocation10 + $0x9c] sm:$0xff]
        %v672 = vld [vmem:[#allocation10 + $0xa4] sm:$0xf]
        %v673 = vld [vmem:[#allocation10 + $0xa8] sm:$0xff]
        %v674 = vld [vmem:[#allocation10 + $0xb0] sm:$0xf]
        %v675 = vld [vmem:[#allocation10 + $0xb4] sm:$0xff]
        %v676 = vld [vmem:[#allocation10 + $0xbc] sm:$0xf]
        %v709 = vunpack.c.l.b16 %v645
        %v710 = vunpack.c.h.b16 %v645
        %v711 = vunpack.c.l.b16 %v646
        %v712 = vunpack.c.l.b16 %v647
        %v713 = vunpack.c.h.b16 %v647
        %v714 = vunpack.c.l.b16 %v648
        %v715 = vunpack.c.l.b16 %v649
        %v716 = vunpack.c.h.b16 %v649
        %v717 = vunpack.c.l.b16 %v650
        %v718 = vunpack.c.l.b16 %v651
        %v719 = vunpack.c.h.b16 %v651
        %v720 = vunpack.c.l.b16 %v652
        %v721 = vunpack.c.l.b16 %v653
        %v722 = vunpack.c.h.b16 %v653
        %v723 = vunpack.c.l.b16 %v654
        %v724 = vunpack.c.l.b16 %v655
        %v725 = vunpack.c.h.b16 %v655
        %v726 = vunpack.c.l.b16 %v656
        %v727 = vunpack.c.l.b16 %v657
        %v728 = vunpack.c.h.b16 %v657
        %v729 = vunpack.c.l.b16 %v658
        %v730 = vunpack.c.l.b16 %v659
        %v731 = vunpack.c.h.b16 %v659
        %v732 = vunpack.c.l.b16 %v660
        %v733 = vunpack.c.l.b16 %v661
        %v734 = vunpack.c.h.b16 %v661
        %v735 = vunpack.c.l.b16 %v662
        %v736 = vunpack.c.l.b16 %v663
        %v737 = vunpack.c.h.b16 %v663
        %v738 = vunpack.c.l.b16 %v664
        %v739 = vunpack.c.l.b16 %v665
        %v740 = vunpack.c.h.b16 %v665
        %v741 = vunpack.c.l.b16 %v666
        %v742 = vunpack.c.l.b16 %v667
        %v743 = vunpack.c.h.b16 %v667
        %v744 = vunpack.c.l.b16 %v668
        %v745 = vunpack.c.l.b16 %v669
        %v746 = vunpack.c.h.b16 %v669
        %v747 = vunpack.c.l.b16 %v670
        %v748 = vunpack.c.l.b16 %v671
        %v749 = vunpack.c.h.b16 %v671
        %v750 = vunpack.c.l.b16 %v672
        %v751 = vunpack.c.l.b16 %v673
        %v752 = vunpack.c.h.b16 %v673
        %v753 = vunpack.c.l.b16 %v674
        %v754 = vunpack.c.l.b16 %v675
        %v755 = vunpack.c.h.b16 %v675
        %v756 = vunpack.c.l.b16 %v676
        %v757 = vpack.c.b16 %v712, %v709
        %v758 = vpack.c.b16 %v713, %v710
        %v759 = vpack.c.b16 %v714, %v711
        %v760 = vpack.c.b16 %v718, %v715
        %v761 = vpack.c.b16 %v719, %v716
        %v762 = vpack.c.b16 %v720, %v717
        %v763 = vpack.c.b16 %v724, %v721
        %v764 = vpack.c.b16 %v725, %v722
        %v765 = vpack.c.b16 %v726, %v723
        %v766 = vpack.c.b16 %v730, %v727
        %v767 = vpack.c.b16 %v731, %v728
        %v768 = vpack.c.b16 %v732, %v729
        %v769 = vpack.c.b16 %v736, %v733
        %v770 = vpack.c.b16 %v737, %v734
        %v771 = vpack.c.b16 %v738, %v735
        %v772 = vpack.c.b16 %v742, %v739
        %v773 = vpack.c.b16 %v743, %v740
        %v774 = vpack.c.b16 %v744, %v741
        %v775 = vpack.c.b16 %v748, %v745
        %v776 = vpack.c.b16 %v749, %v746
        %v777 = vpack.c.b16 %v750, %v747
        %v778 = vpack.c.b16 %v754, %v751
        %v779 = vpack.c.b16 %v755, %v752
        %v780 = vpack.c.b16 %v756, %v753
        %805 = vmatprep.subr.bf16.mxu0 %v758
        %806 = vmatpush1.bf16.msra.mxu0 %v757
        %807 = vmatprep.subr.bf16.mxu0 %v761
        %808 = vmatpush1.bf16.msra.mxu0 %v760
        %809 = vmatprep.subr.bf16.mxu0 %v764
        %810 = vmatpush1.bf16.msra.mxu0 %v763
        %811 = vmatprep.subr.bf16.mxu0 %v767
        %812 = vmatpush1.bf16.msra.mxu0 %v766
        %813 = vmatprep.subr.bf16.mxu0 %v770
        %814 = vmatpush1.bf16.msra.mxu0 %v769
        %815 = vmatprep.subr.bf16.mxu0 %v773
        %816 = vmatpush1.bf16.msra.mxu0 %v772
        %817 = vmatprep.subr.bf16.mxu0 %v776
        %818 = vmatpush1.bf16.msra.mxu0 %v775
        %819 = vmatprep.subr.bf16.mxu0 %v779
        %820 = vmatpush1.bf16.msra.mxu0 %v778
        %821 = vmatprep.subr.bf16.mxu0 0
        %822 = vmatpush1.bf16.msra.mxu0 0
        %823 = vmatprep.subr.bf16.mxu0 0
        %824 = vmatpush1.bf16.msra.mxu0 0
        %825 = vmatprep.subr.bf16.mxu0 0
        %826 = vmatpush1.bf16.msra.mxu0 0
        %827 = vmatprep.subr.bf16.mxu0 0
        %828 = vmatpush1.bf16.msra.mxu0 0
        %829 = vmatprep.subr.bf16.mxu0 0
        %830 = vmatpush1.bf16.msra.mxu0 0
        %831 = vmatprep.subr.bf16.mxu0 0
        %832 = vmatpush1.bf16.msra.mxu0 0
        %833 = vmatprep.subr.bf16.mxu0 0
        %834 = vmatpush1.bf16.msra.mxu0 0
        %835 = vmatprep.subr.bf16.mxu0 0
        %836 = vmatpush1.bf16.msra.mxu0 0
        %837 = vmatprep.mubr.bf16.mxu0 0
        %838 = vmatmul.mubr.bf16.gmra.mrb[0].mxu0 %v644
        %v839 = vpop.f32.mrb[0].mxu0
        %v840 = vadd.f32 0.0, %v839
        %v841 = vpop.f32.mrb[0].mxu0
        %v842 = vadd.f32 0.0, %v841
        %v843 = vpop.f32.mrb[0].mxu0
        %v844 = vpop.f32.mrb[0].mxu0
        %845 = vdwg.mxu0
        %846 = vmatprep.subr.bf16.mxu0 0
        %847 = vmatpush1.bf16.msra.mxu0 %v759
        %848 = vmatprep.subr.bf16.mxu0 0
        %849 = vmatpush1.bf16.msra.mxu0 %v762
        %850 = vmatprep.subr.bf16.mxu0 0
        %851 = vmatpush1.bf16.msra.mxu0 %v765
        %852 = vmatprep.subr.bf16.mxu0 0
        %853 = vmatpush1.bf16.msra.mxu0 %v768
        %854 = vmatprep.subr.bf16.mxu0 0
        %855 = vmatpush1.bf16.msra.mxu0 %v771
        %856 = vmatprep.subr.bf16.mxu0 0
        %857 = vmatpush1.bf16.msra.mxu0 %v774
        %858 = vmatprep.subr.bf16.mxu0 0
        %859 = vmatpush1.bf16.msra.mxu0 %v777
        %860 = vmatprep.subr.bf16.mxu0 0
        %861 = vmatpush1.bf16.msra.mxu0 %v780
        %862 = vmatprep.subr.bf16.mxu0 0
        %863 = vmatpush1.bf16.msra.mxu0 0
        %864 = vmatprep.subr.bf16.mxu0 0
        %865 = vmatpush1.bf16.msra.mxu0 0
        %866 = vmatprep.subr.bf16.mxu0 0
        %867 = vmatpush1.bf16.msra.mxu0 0
        %868 = vmatprep.subr.bf16.mxu0 0
        %869 = vmatpush1.bf16.msra.mxu0 0
        %870 = vmatprep.subr.bf16.mxu0 0
        %871 = vmatpush1.bf16.msra.mxu0 0
        %872 = vmatprep.subr.bf16.mxu0 0
        %873 = vmatpush1.bf16.msra.mxu0 0
        %874 = vmatprep.subr.bf16.mxu0 0
        %875 = vmatpush1.bf16.msra.mxu0 0
        %876 = vmatprep.subr.bf16.mxu0 0
        %877 = vmatpush1.bf16.msra.mxu0 0
        %878 = vmatprep.mubr.bf16.mxu0 0
        %879 = vmatmul.mubr.bf16.gmra.mrb[0].mxu0 %v644
        %v880 = vpop.f32.mrb[0].mxu0
        %v881 = vadd.f32 0.0, %v880
        %v882 = vpop.f32.mrb[0].mxu0
        %v883 = vpop.f32.mrb[0].mxu0
        %v884 = vpop.f32.mrb[0].mxu0
        %885 = vdwg.mxu0
        %v886 = vmul.f32 %v840, 0.088388346
        %v887 = vpack.c.bf16 %v886, %v886
        %v888 = vpack.c.bf16 %v842, %v842
        %v889 = vpack.c.bf16 %v881, %v881
        %v890 = vld [vmem:[#allocation5] sm:$0xff]
        %vm891 = vcmask 261120
        %v893 = vsel %vm891, %v887, 0
        %v896 = vsel %vm891, %v888, 0
        %898 = vmatprep.subr.bf16.mxu0 0
        %899 = vmatpush1.bf16.xpose.msra.mxu0 %v896
        %900 = vmatprep.subr.bf16.mxu0 0
        %901 = vmatpush1.bf16.xpose.msra.mxu0 0
        %902 = vmatprep.subr.bf16.mxu0 0
        %903 = vmatpush1.bf16.xpose.msra.mxu0 0
        %904 = vmatprep.subr.bf16.mxu0 0
        %905 = vmatpush1.bf16.xpose.msra.mxu0 0
        %906 = vmatprep.subr.bf16.mxu0 0
        %907 = vmatpush1.bf16.xpose.msra.mxu0 0
        %908 = vmatprep.subr.bf16.mxu0 0
        %909 = vmatpush1.bf16.xpose.msra.mxu0 0
        %910 = vmatprep.subr.bf16.mxu0 0
        %911 = vmatpush1.bf16.xpose.msra.mxu0 0
        %912 = vmatprep.subr.bf16.mxu0 0
        %913 = vmatpush1.bf16.xpose.msra.mxu0 0
        %914 = vmatprep.subr.bf16.mxu0 0
        %915 = vmatpush1.bf16.xpose.msra.mxu0 0
        %916 = vmatprep.subr.bf16.mxu0 0
        %917 = vmatpush1.bf16.xpose.msra.mxu0 0
        %918 = vmatprep.subr.bf16.mxu0 0
        %919 = vmatpush1.bf16.xpose.msra.mxu0 0
        %920 = vmatprep.subr.bf16.mxu0 0
        %921 = vmatpush1.bf16.xpose.msra.mxu0 0
        %922 = vmatprep.subr.bf16.mxu0 0
        %923 = vmatpush1.bf16.xpose.msra.mxu0 0
        %924 = vmatprep.subr.bf16.mxu0 0
        %925 = vmatpush1.bf16.xpose.msra.mxu0 0
        %926 = vmatprep.subr.bf16.mxu0 0
        %927 = vmatpush1.bf16.xpose.msra.mxu0 0
        %928 = vmatprep.subr.bf16.mxu0 0
        %929 = vmatpush1.bf16.xpose.msra.mxu0 0
        %930 = vmatprep.mubr.bf16.mxu0 0
        %931 = vmatmul.mubr.bf16.gmra.mrb[0].mxu0 %v893
        %v932 = vpop.f32.mrb[0].mxu0
        %v933 = vadd.f32 %v890, %v932
        %v934 = vpop.f32.mrb[0].mxu0
        %v935 = vpop.f32.mrb[0].mxu0
        %v936 = vpop.f32.mrb[0].mxu0
        %937 = vdwg.mxu0
        %vm938 = vcmask 64512
        %v939 = vsel %vm938, %v933, -inf
        %940 = vmax.xlane.f32.xlu0 %v939
        %v941 = vpop.xlane.xlu0 %940
        %v942 = vsub.f32 %v933, %v941
        %v943 = vmul.f32 %v942, 1.442695
        %v944 = vpow.pop %v943
        %v945 = vsel %vm938, %v944, 0.0
        %946 = vadd.xlane.f32.xlu0 %v945
        %v947 = vpop.xlane.xlu0 %946
        %v948 = vpack.c.bf16 %v944, %v944
        %v950 = vsel %vm938, %v948, 0
        %vm952 = vcmask 1043456
        %v954 = vsel %vm952, %v889, 0
        %956 = vmatprep.subr.bf16.mxu0 0
        %957 = vmatpush1.bf16.msra.mxu0 %v954
        %958 = vmatprep.subr.bf16.mxu0 0
        %959 = vmatpush1.bf16.msra.mxu0 0
        %960 = vmatprep.subr.bf16.mxu0 0
        %961 = vmatpush1.bf16.msra.mxu0 0
        %962 = vmatprep.subr.bf16.mxu0 0
        %963 = vmatpush1.bf16.msra.mxu0 0
        %964 = vmatprep.subr.bf16.mxu0 0
        %965 = vmatpush1.bf16.msra.mxu0 0
        %966 = vmatprep.subr.bf16.mxu0 0
        %967 = vmatpush1.bf16.msra.mxu0 0
        %968 = vmatprep.subr.bf16.mxu0 0
        %969 = vmatpush1.bf16.msra.mxu0 0
        %970 = vmatprep.subr.bf16.mxu0 0
        %971 = vmatpush1.bf16.msra.mxu0 0
        %972 = vmatprep.subr.bf16.mxu0 0
        %973 = vmatpush1.bf16.msra.mxu0 0
        %974 = vmatprep.subr.bf16.mxu0 0
        %975 = vmatpush1.bf16.msra.mxu0 0
        %976 = vmatprep.subr.bf16.mxu0 0
        %977 = vmatpush1.bf16.msra.mxu0 0
        %978 = vmatprep.subr.bf16.mxu0 0
        %979 = vmatpush1.bf16.msra.mxu0 0
        %980 = vmatprep.subr.bf16.mxu0 0
        %981 = vmatpush1.bf16.msra.mxu0 0
        %982 = vmatprep.subr.bf16.mxu0 0
        %983 = vmatpush1.bf16.msra.mxu0 0
        %984 = vmatprep.subr.bf16.mxu0 0
        %985 = vmatpush1.bf16.msra.mxu0 0
        %986 = vmatprep.subr.bf16.mxu0 0
        %987 = vmatpush1.bf16.msra.mxu0 0
        %988 = vmatprep.mubr.bf16.mxu0 0
        %989 = vmatmul.mubr.bf16.gmra.mrb[0].mxu0 %v950
        %v990 = vpop.f32.mrb[0].mxu0
        %v991 = vadd.f32 0.0, %v990
        %v992 = vpop.f32.mrb[0].mxu0
        %v993 = vpop.f32.mrb[0].mxu0
        %v994 = vpop.f32.mrb[0].mxu0
        %995 = vdwg.mxu0
        %v996 = vrcp.pop %v947
        %v997 = vmul.f32 %v991, %v996
        %v998 = vpack.c.bf16 %v997, %v997
        %v999 = vld [vmem:[#allocation11] sm:$0xf]
        %v1000 = vld [vmem:[#allocation11 + $0x4] sm:$0xf]
        %v1001 = vld [vmem:[#allocation11 + $0x8] sm:$0xf]
        %v1002 = vld [vmem:[#allocation11 + $0xc] sm:$0xf]
        %1004 = vrot.lane.b32.xlu0 %v887, 96
        %v1005 = vpop.permute.xlu0 %1004
        %1007 = vrot.lane.b32.xlu0 %v888, 96
        %v1008 = vpop.permute.xlu0 %1007
        %v1010 = vsel %vm891, %v1005, 0
        %v1013 = vsel %vm891, %v1008, 0
        %1015 = vmatprep.subr.bf16.mxu0 0
        %1016 = vmatpush1.bf16.xpose.msra.mxu0 %v1013
        %1017 = vmatprep.subr.bf16.mxu0 0
        %1018 = vmatpush1.bf16.xpose.msra.mxu0 0
        %1019 = vmatprep.subr.bf16.mxu0 0
        %1020 = vmatpush1.bf16.xpose.msra.mxu0 0
        %1021 = vmatprep.subr.bf16.mxu0 0
        %1022 = vmatpush1.bf16.xpose.msra.mxu0 0
        %1023 = vmatprep.subr.bf16.mxu0 0
        %1024 = vmatpush1.bf16.xpose.msra.mxu0 0
        %1025 = vmatprep.subr.bf16.mxu0 0
        %1026 = vmatpush1.bf16.xpose.msra.mxu0 0
        %1027 = vmatprep.subr.bf16.mxu0 0
        %1028 = vmatpush1.bf16.xpose.msra.mxu0 0
        %1029 = vmatprep.subr.bf16.mxu0 0
        %1030 = vmatpush1.bf16.xpose.msra.mxu0 0
        %1031 = vmatprep.subr.bf16.mxu0 0
        %1032 = vmatpush1.bf16.xpose.msra.mxu0 0
        %1033 = vmatprep.subr.bf16.mxu0 0
        %1034 = vmatpush1.bf16.xpose.msra.mxu0 0
        %1035 = vmatprep.subr.bf16.mxu0 0
        %1036 = vmatpush1.bf16.xpose.msra.mxu0 0
        %1037 = vmatprep.subr.bf16.mxu0 0
        %1038 = vmatpush1.bf16.xpose.msra.mxu0 0
        %1039 = vmatprep.subr.bf16.mxu0 0
        %1040 = vmatpush1.bf16.xpose.msra.mxu0 0
        %1041 = vmatprep.subr.bf16.mxu0 0
        %1042 = vmatpush1.bf16.xpose.msra.mxu0 0
        %1043 = vmatprep.subr.bf16.mxu0 0
        %1044 = vmatpush1.bf16.xpose.msra.mxu0 0
        %1045 = vmatprep.subr.bf16.mxu0 0
        %1046 = vmatpush1.bf16.xpose.msra.mxu0 0
        %1047 = vmatprep.mubr.bf16.mxu0 0
        %1048 = vmatmul.mubr.bf16.gmra.mrb[0].mxu0 %v1010
        %v1049 = vpop.f32.mrb[0].mxu0
        %v1050 = vadd.f32 %v890, %v1049
        %v1051 = vpop.f32.mrb[0].mxu0
        %v1052 = vpop.f32.mrb[0].mxu0
        %v1053 = vpop.f32.mrb[0].mxu0
        %1054 = vdwg.mxu0
        %v1055 = vsel %vm938, %v1050, -inf
        %1056 = vmax.xlane.f32.xlu0 %v1055
        %v1057 = vpop.xlane.xlu0 %1056
        %v1058 = vsub.f32 %v1050, %v1057
        %v1059 = vmul.f32 %v1058, 1.442695
        %v1060 = vpow.pop %v1059
        %v1061 = vsel %vm938, %v1060, 0.0
        %1062 = vadd.xlane.f32.xlu0 %v1061
        %v1063 = vpop.xlane.xlu0 %1062
        %v1064 = vpack.c.bf16 %v1060, %v1060
        %1066 = vrot.lane.b32.xlu0 %v889, 96
        %v1067 = vpop.permute.xlu0 %1066
        %v1069 = vsel %vm938, %v1064, 0
        %v1072 = vsel %vm952, %v1067, 0
        %1074 = vmatprep.subr.bf16.mxu0 0
        %1075 = vmatpush1.bf16.msra.mxu0 %v1072
        %1076 = vmatprep.subr.bf16.mxu0 0
        %1077 = vmatpush1.bf16.msra.mxu0 0
        %1078 = vmatprep.subr.bf16.mxu0 0
        %1079 = vmatpush1.bf16.msra.mxu0 0
        %1080 = vmatprep.subr.bf16.mxu0 0
        %1081 = vmatpush1.bf16.msra.mxu0 0
        %1082 = vmatprep.subr.bf16.mxu0 0
        %1083 = vmatpush1.bf16.msra.mxu0 0
        %1084 = vmatprep.subr.bf16.mxu0 0
        %1085 = vmatpush1.bf16.msra.mxu0 0
        %1086 = vmatprep.subr.bf16.mxu0 0
        %1087 = vmatpush1.bf16.msra.mxu0 0
        %1088 = vmatprep.subr.bf16.mxu0 0
        %1089 = vmatpush1.bf16.msra.mxu0 0
        %1090 = vmatprep.subr.bf16.mxu0 0
        %1091 = vmatpush1.bf16.msra.mxu0 0
        %1092 = vmatprep.subr.bf16.mxu0 0
        %1093 = vmatpush1.bf16.msra.mxu0 0
        %1094 = vmatprep.subr.bf16.mxu0 0
        %1095 = vmatpush1.bf16.msra.mxu0 0
        %1096 = vmatprep.subr.bf16.mxu0 0
        %1097 = vmatpush1.bf16.msra.mxu0 0
        %1098 = vmatprep.subr.bf16.mxu0 0
        %1099 = vmatpush1.bf16.msra.mxu0 0
        %1100 = vmatprep.subr.bf16.mxu0 0
        %1101 = vmatpush1.bf16.msra.mxu0 0
        %1102 = vmatprep.subr.bf16.mxu0 0
        %1103 = vmatpush1.bf16.msra.mxu0 0
        %1104 = vmatprep.subr.bf16.mxu0 0
        %1105 = vmatpush1.bf16.msra.mxu0 0
        %1106 = vmatprep.mubr.bf16.mxu0 0
        %1107 = vmatmul.mubr.bf16.gmra.mrb[0].mxu0 %v1069
        %v1108 = vpop.f32.mrb[0].mxu0
        %v1109 = vadd.f32 0.0, %v1108
        %v1110 = vpop.f32.mrb[0].mxu0
        %v1111 = vpop.f32.mrb[0].mxu0
        %v1112 = vpop.f32.mrb[0].mxu0
        %1113 = vdwg.mxu0
        %v1114 = vrcp.pop %v1063
        %v1115 = vmul.f32 %v1109, %v1114
        %v1116 = vpack.c.bf16 %v1115, %v1115
        %v1117 = vld [vmem:[#allocation11 + $0x10] sm:$0xf]
        %v1118 = vld [vmem:[#allocation11 + $0x14] sm:$0xf]
        %v1119 = vld [vmem:[#allocation11 + $0x18] sm:$0xf]
        %v1120 = vld [vmem:[#allocation11 + $0x1c] sm:$0xf]
        %v1125 = vunpack.c.l.b16 %v1117
        %v1126 = vunpack.c.l.b16 %v1118
        %v1127 = vunpack.c.l.b16 %v1119
        %v1128 = vunpack.c.l.b16 %v1120
        %v1129 = vpack.c.b16 %v1126, %v1125
        %v1130 = vpack.c.b16 %v1128, %v1127
        %v1134 = vsel %vm891, %v1116, 0
        %1136 = vmatprep.subr.bf16.mxu0 0
        %1137 = vmatpush1.bf16.msra.mxu0 %v1129
        %1138 = vmatprep.subr.bf16.mxu0 0
        %1139 = vmatpush1.bf16.msra.mxu0 %v1130
        %1140 = vmatprep.subr.bf16.mxu0 0
        %1141 = vmatpush1.bf16.msra.mxu0 0
        %1142 = vmatprep.subr.bf16.mxu0 0
        %1143 = vmatpush1.bf16.msra.mxu0 0
        %1144 = vmatprep.subr.bf16.mxu0 0
        %1145 = vmatpush1.bf16.msra.mxu0 0
        %1146 = vmatprep.subr.bf16.mxu0 0
        %1147 = vmatpush1.bf16.msra.mxu0 0
        %1148 = vmatprep.subr.bf16.mxu0 0
        %1149 = vmatpush1.bf16.msra.mxu0 0
        %1150 = vmatprep.subr.bf16.mxu0 0
        %1151 = vmatpush1.bf16.msra.mxu0 0
        %1152 = vmatprep.subr.bf16.mxu0 0
        %1153 = vmatpush1.bf16.msra.mxu0 0
        %1154 = vmatprep.subr.bf16.mxu0 0
        %1155 = vmatpush1.bf16.msra.mxu0 0
        %1156 = vmatprep.subr.bf16.mxu0 0
        %1157 = vmatpush1.bf16.msra.mxu0 0
        %1158 = vmatprep.subr.bf16.mxu0 0
        %1159 = vmatpush1.bf16.msra.mxu0 0
        %1160 = vmatprep.subr.bf16.mxu0 0
        %1161 = vmatpush1.bf16.msra.mxu0 0
        %1162 = vmatprep.subr.bf16.mxu0 0
        %1163 = vmatpush1.bf16.msra.mxu0 0
        %1164 = vmatprep.subr.bf16.mxu0 0
        %1165 = vmatpush1.bf16.msra.mxu0 0
        %1166 = vmatprep.subr.bf16.mxu0 0
        %1167 = vmatpush1.bf16.msra.mxu0 0
        %1168 = vmatprep.mubr.bf16.mxu0 0
        %1169 = vmatmul.mubr.bf16.gmra.mrb[0].mxu0 %v1134
        %v1170 = vpop.f32.mrb[0].mxu0
        %v1171 = vadd.f32 0.0, %v1170
        %v1172 = vpop.f32.mrb[0].mxu0
        %v1173 = vpop.f32.mrb[0].mxu0
        %v1174 = vpop.f32.mrb[0].mxu0
        %1175 = vdwg.mxu0
        %v1180 = vunpack.c.l.b16 %v999
        %v1181 = vunpack.c.l.b16 %v1000
        %v1182 = vunpack.c.l.b16 %v1001
        %v1183 = vunpack.c.l.b16 %v1002
        %v1184 = vpack.c.b16 %v1181, %v1180
        %v1185 = vpack.c.b16 %v1183, %v1182
        %v1189 = vsel %vm891, %v998, 0
        %1191 = vmatprep.subr.bf16.mxu0 0
        %1192 = vmatpush1.bf16.msra.mxu0 %v1184
        %1193 = vmatprep.subr.bf16.mxu0 0
        %1194 = vmatpush1.bf16.msra.mxu0 %v1185
        %1195 = vmatprep.subr.bf16.mxu0 0
        %1196 = vmatpush1.bf16.msra.mxu0 0
        %1197 = vmatprep.subr.bf16.mxu0 0
        %1198 = vmatpush1.bf16.msra.mxu0 0
        %1199 = vmatprep.subr.bf16.mxu0 0
        %1200 = vmatpush1.bf16.msra.mxu0 0
        %1201 = vmatprep.subr.bf16.mxu0 0
        %1202 = vmatpush1.bf16.msra.mxu0 0
        %1203 = vmatprep.subr.bf16.mxu0 0
        %1204 = vmatpush1.bf16.msra.mxu0 0
        %1205 = vmatprep.subr.bf16.mxu0 0
        %1206 = vmatpush1.bf16.msra.mxu0 0
        %1207 = vmatprep.subr.bf16.mxu0 0
        %1208 = vmatpush1.bf16.msra.mxu0 0
        %1209 = vmatprep.subr.bf16.mxu0 0
        %1210 = vmatpush1.bf16.msra.mxu0 0
        %1211 = vmatprep.subr.bf16.mxu0 0
        %1212 = vmatpush1.bf16.msra.mxu0 0
        %1213 = vmatprep.subr.bf16.mxu0 0
        %1214 = vmatpush1.bf16.msra.mxu0 0
        %1215 = vmatprep.subr.bf16.mxu0 0
        %1216 = vmatpush1.bf16.msra.mxu0 0
        %1217 = vmatprep.subr.bf16.mxu0 0
        %1218 = vmatpush1.bf16.msra.mxu0 0
        %1219 = vmatprep.subr.bf16.mxu0 0
        %1220 = vmatpush1.bf16.msra.mxu0 0
        %1221 = vmatprep.subr.bf16.mxu0 0
        %1222 = vmatpush1.bf16.msra.mxu0 0
        %1223 = vmatprep.mubr.bf16.mxu0 0
        %1224 = vmatmul.mubr.bf16.gmra.mrb[0].mxu0 %v1189
        %v1225 = vpop.f32.mrb[0].mxu0
        %v1226 = vadd.f32 %v1171, %v1225
        %v1227 = vpop.f32.mrb[0].mxu0
        %v1228 = vpop.f32.mrb[0].mxu0
        %v1229 = vpop.f32.mrb[0].mxu0
        %1230 = vdwg.mxu0
        %1231 = vrot.lane.b32.xlu0 %v887, 64
        %v1232 = vpop.permute.xlu0 %1231
        %1233 = vrot.lane.b32.xlu0 %v888, 64
        %v1234 = vpop.permute.xlu0 %1233
        %v1236 = vsel %vm891, %v1232, 0
        %v1239 = vsel %vm891, %v1234, 0
        %1241 = vmatprep.subr.bf16.mxu0 0
        %1242 = vmatpush1.bf16.xpose.msra.mxu0 %v1239
        %1243 = vmatprep.subr.bf16.mxu0 0
        %1244 = vmatpush1.bf16.xpose.msra.mxu0 0
        %1245 = vmatprep.subr.bf16.mxu0 0
        %1246 = vmatpush1.bf16.xpose.msra.mxu0 0
        %1247 = vmatprep.subr.bf16.mxu0 0
        %1248 = vmatpush1.bf16.xpose.msra.mxu0 0
        %1249 = vmatprep.subr.bf16.mxu0 0
        %1250 = vmatpush1.bf16.xpose.msra.mxu0 0
        %1251 = vmatprep.subr.bf16.mxu0 0
        %1252 = vmatpush1.bf16.xpose.msra.mxu0 0
        %1253 = vmatprep.subr.bf16.mxu0 0
        %1254 = vmatpush1.bf16.xpose.msra.mxu0 0
        %1255 = vmatprep.subr.bf16.mxu0 0
        %1256 = vmatpush1.bf16.xpose.msra.mxu0 0
        %1257 = vmatprep.subr.bf16.mxu0 0
        %1258 = vmatpush1.bf16.xpose.msra.mxu0 0
        %1259 = vmatprep.subr.bf16.mxu0 0
        %1260 = vmatpush1.bf16.xpose.msra.mxu0 0
        %1261 = vmatprep.subr.bf16.mxu0 0
        %1262 = vmatpush1.bf16.xpose.msra.mxu0 0
        %1263 = vmatprep.subr.bf16.mxu0 0
        %1264 = vmatpush1.bf16.xpose.msra.mxu0 0
        %1265 = vmatprep.subr.bf16.mxu0 0
        %1266 = vmatpush1.bf16.xpose.msra.mxu0 0
        %1267 = vmatprep.subr.bf16.mxu0 0
        %1268 = vmatpush1.bf16.xpose.msra.mxu0 0
        %1269 = vmatprep.subr.bf16.mxu0 0
        %1270 = vmatpush1.bf16.xpose.msra.mxu0 0
        %1271 = vmatprep.subr.bf16.mxu0 0
        %1272 = vmatpush1.bf16.xpose.msra.mxu0 0
        %1273 = vmatprep.mubr.bf16.mxu0 0
        %1274 = vmatmul.mubr.bf16.gmra.mrb[0].mxu0 %v1236
        %v1275 = vpop.f32.mrb[0].mxu0
        %v1276 = vadd.f32 %v890, %v1275
        %v1277 = vpop.f32.mrb[0].mxu0
        %v1278 = vpop.f32.mrb[0].mxu0
        %v1279 = vpop.f32.mrb[0].mxu0
        %1280 = vdwg.mxu0
        %v1281 = vsel %vm938, %v1276, -inf
        %1282 = vmax.xlane.f32.xlu0 %v1281
        %v1283 = vpop.xlane.xlu0 %1282
        %v1284 = vsub.f32 %v1276, %v1283
        %v1285 = vmul.f32 %v1284, 1.442695
        %v1286 = vpow.pop %v1285
        %v1287 = vsel %vm938, %v1286, 0.0
        %1288 = vadd.xlane.f32.xlu0 %v1287
        %v1289 = vpop.xlane.xlu0 %1288
        %v1290 = vpack.c.bf16 %v1286, %v1286
        %1291 = vrot.lane.b32.xlu0 %v889, 64
        %v1292 = vpop.permute.xlu0 %1291
        %v1294 = vsel %vm938, %v1290, 0
        %v1297 = vsel %vm952, %v1292, 0
        %1299 = vmatprep.subr.bf16.mxu0 0
        %1300 = vmatpush1.bf16.msra.mxu0 %v1297
        %1301 = vmatprep.subr.bf16.mxu0 0
        %1302 = vmatpush1.bf16.msra.mxu0 0
        %1303 = vmatprep.subr.bf16.mxu0 0
        %1304 = vmatpush1.bf16.msra.mxu0 0
        %1305 = vmatprep.subr.bf16.mxu0 0
        %1306 = vmatpush1.bf16.msra.mxu0 0
        %1307 = vmatprep.subr.bf16.mxu0 0
        %1308 = vmatpush1.bf16.msra.mxu0 0
        %1309 = vmatprep.subr.bf16.mxu0 0
        %1310 = vmatpush1.bf16.msra.mxu0 0
        %1311 = vmatprep.subr.bf16.mxu0 0
        %1312 = vmatpush1.bf16.msra.mxu0 0
        %1313 = vmatprep.subr.bf16.mxu0 0
        %1314 = vmatpush1.bf16.msra.mxu0 0
        %1315 = vmatprep.subr.bf16.mxu0 0
        %1316 = vmatpush1.bf16.msra.mxu0 0
        %1317 = vmatprep.subr.bf16.mxu0 0
        %1318 = vmatpush1.bf16.msra.mxu0 0
        %1319 = vmatprep.subr.bf16.mxu0 0
        %1320 = vmatpush1.bf16.msra.mxu0 0
        %1321 = vmatprep.subr.bf16.mxu0 0
        %1322 = vmatpush1.bf16.msra.mxu0 0
        %1323 = vmatprep.subr.bf16.mxu0 0
        %1324 = vmatpush1.bf16.msra.mxu0 0
        %1325 = vmatprep.subr.bf16.mxu0 0
        %1326 = vmatpush1.bf16.msra.mxu0 0
        %1327 = vmatprep.subr.bf16.mxu0 0
        %1328 = vmatpush1.bf16.msra.mxu0 0
        %1329 = vmatprep.subr.bf16.mxu0 0
        %1330 = vmatpush1.bf16.msra.mxu0 0
        %1331 = vmatprep.mubr.bf16.mxu0 0
        %1332 = vmatmul.mubr.bf16.gmra.mrb[0].mxu0 %v1294
        %v1333 = vpop.f32.mrb[0].mxu0
        %v1334 = vadd.f32 0.0, %v1333
        %v1335 = vpop.f32.mrb[0].mxu0
        %v1336 = vpop.f32.mrb[0].mxu0
        %v1337 = vpop.f32.mrb[0].mxu0
        %1338 = vdwg.mxu0
        %v1339 = vrcp.pop %v1289
        %v1340 = vmul.f32 %v1334, %v1339
        %v1341 = vpack.c.bf16 %v1340, %v1340
        %v1342 = vld [vmem:[#allocation11 + $0x20] sm:$0xf]
        %v1343 = vld [vmem:[#allocation11 + $0x24] sm:$0xf]
        %v1344 = vld [vmem:[#allocation11 + $0x28] sm:$0xf]
        %v1345 = vld [vmem:[#allocation11 + $0x2c] sm:$0xf]
        %v1350 = vunpack.c.l.b16 %v1342
        %v1351 = vunpack.c.l.b16 %v1343
        %v1352 = vunpack.c.l.b16 %v1344
        %v1353 = vunpack.c.l.b16 %v1345
        %v1354 = vpack.c.b16 %v1351, %v1350
        %v1355 = vpack.c.b16 %v1353, %v1352
        %v1359 = vsel %vm891, %v1341, 0
        %1361 = vmatprep.subr.bf16.mxu0 0
        %1362 = vmatpush1.bf16.msra.mxu0 %v1354
        %1363 = vmatprep.subr.bf16.mxu0 0
        %1364 = vmatpush1.bf16.msra.mxu0 %v1355
        %1365 = vmatprep.subr.bf16.mxu0 0
        %1366 = vmatpush1.bf16.msra.mxu0 0
        %1367 = vmatprep.subr.bf16.mxu0 0
        %1368 = vmatpush1.bf16.msra.mxu0 0
        %1369 = vmatprep.subr.bf16.mxu0 0
        %1370 = vmatpush1.bf16.msra.mxu0 0
        %1371 = vmatprep.subr.bf16.mxu0 0
        %1372 = vmatpush1.bf16.msra.mxu0 0
        %1373 = vmatprep.subr.bf16.mxu0 0
        %1374 = vmatpush1.bf16.msra.mxu0 0
        %1375 = vmatprep.subr.bf16.mxu0 0
        %1376 = vmatpush1.bf16.msra.mxu0 0
        %1377 = vmatprep.subr.bf16.mxu0 0
        %1378 = vmatpush1.bf16.msra.mxu0 0
        %1379 = vmatprep.subr.bf16.mxu0 0
        %1380 = vmatpush1.bf16.msra.mxu0 0
        %1381 = vmatprep.subr.bf16.mxu0 0
        %1382 = vmatpush1.bf16.msra.mxu0 0
        %1383 = vmatprep.subr.bf16.mxu0 0
        %1384 = vmatpush1.bf16.msra.mxu0 0
        %1385 = vmatprep.subr.bf16.mxu0 0
        %1386 = vmatpush1.bf16.msra.mxu0 0
        %1387 = vmatprep.subr.bf16.mxu0 0
        %1388 = vmatpush1.bf16.msra.mxu0 0
        %1389 = vmatprep.subr.bf16.mxu0 0
        %1390 = vmatpush1.bf16.msra.mxu0 0
        %1391 = vmatprep.subr.bf16.mxu0 0
        %1392 = vmatpush1.bf16.msra.mxu0 0
        %1393 = vmatprep.mubr.bf16.mxu0 0
        %1394 = vmatmul.mubr.bf16.gmra.mrb[0].mxu0 %v1359
        %v1395 = vpop.f32.mrb[0].mxu0
        %v1396 = vadd.f32 0.0, %v1395
        %v1397 = vpop.f32.mrb[0].mxu0
        %v1398 = vpop.f32.mrb[0].mxu0
        %v1399 = vpop.f32.mrb[0].mxu0
        %1400 = vdwg.mxu0
        %v1401 = vadd.f32 %v1226, %v1396
        %1402 = vrot.lane.b32.xlu0 %v887, 32
        %v1403 = vpop.permute.xlu0 %1402
        %1404 = vrot.lane.b32.xlu0 %v888, 32
        %v1405 = vpop.permute.xlu0 %1404
        %v1407 = vsel %vm891, %v1403, 0
        %v1410 = vsel %vm891, %v1405, 0
        %1412 = vmatprep.subr.bf16.mxu0 0
        %1413 = vmatpush1.bf16.xpose.msra.mxu0 %v1410
        %1414 = vmatprep.subr.bf16.mxu0 0
        %1415 = vmatpush1.bf16.xpose.msra.mxu0 0
        %1416 = vmatprep.subr.bf16.mxu0 0
        %1417 = vmatpush1.bf16.xpose.msra.mxu0 0
        %1418 = vmatprep.subr.bf16.mxu0 0
        %1419 = vmatpush1.bf16.xpose.msra.mxu0 0
        %1420 = vmatprep.subr.bf16.mxu0 0
        %1421 = vmatpush1.bf16.xpose.msra.mxu0 0
        %1422 = vmatprep.subr.bf16.mxu0 0
        %1423 = vmatpush1.bf16.xpose.msra.mxu0 0
        %1424 = vmatprep.subr.bf16.mxu0 0
        %1425 = vmatpush1.bf16.xpose.msra.mxu0 0
        %1426 = vmatprep.subr.bf16.mxu0 0
        %1427 = vmatpush1.bf16.xpose.msra.mxu0 0
        %1428 = vmatprep.subr.bf16.mxu0 0
        %1429 = vmatpush1.bf16.xpose.msra.mxu0 0
        %1430 = vmatprep.subr.bf16.mxu0 0
        %1431 = vmatpush1.bf16.xpose.msra.mxu0 0
        %1432 = vmatprep.subr.bf16.mxu0 0
        %1433 = vmatpush1.bf16.xpose.msra.mxu0 0
        %1434 = vmatprep.subr.bf16.mxu0 0
        %1435 = vmatpush1.bf16.xpose.msra.mxu0 0
        %1436 = vmatprep.subr.bf16.mxu0 0
        %1437 = vmatpush1.bf16.xpose.msra.mxu0 0
        %1438 = vmatprep.subr.bf16.mxu0 0
        %1439 = vmatpush1.bf16.xpose.msra.mxu0 0
        %1440 = vmatprep.subr.bf16.mxu0 0
        %1441 = vmatpush1.bf16.xpose.msra.mxu0 0
        %1442 = vmatprep.subr.bf16.mxu0 0
        %1443 = vmatpush1.bf16.xpose.msra.mxu0 0
        %1444 = vmatprep.mubr.bf16.mxu0 0
        %1445 = vmatmul.mubr.bf16.gmra.mrb[0].mxu0 %v1407
        %v1446 = vpop.f32.mrb[0].mxu0
        %v1447 = vadd.f32 %v890, %v1446
        %v1448 = vpop.f32.mrb[0].mxu0
        %v1449 = vpop.f32.mrb[0].mxu0
        %v1450 = vpop.f32.mrb[0].mxu0
        %1451 = vdwg.mxu0
        %v1452 = vsel %vm938, %v1447, -inf
        %1453 = vmax.xlane.f32.xlu0 %v1452
        %v1454 = vpop.xlane.xlu0 %1453
        %v1455 = vsub.f32 %v1447, %v1454
        %v1456 = vmul.f32 %v1455, 1.442695
        %v1457 = vpow.pop %v1456
        %v1458 = vsel %vm938, %v1457, 0.0
        %1459 = vadd.xlane.f32.xlu0 %v1458
        %v1460 = vpop.xlane.xlu0 %1459
        %v1461 = vpack.c.bf16 %v1457, %v1457
        %1462 = vrot.lane.b32.xlu0 %v889, 32
        %v1463 = vpop.permute.xlu0 %1462
        %v1465 = vsel %vm938, %v1461, 0
        %v1468 = vsel %vm952, %v1463, 0
        %1470 = vmatprep.subr.bf16.mxu0 0
        %1471 = vmatpush1.bf16.msra.mxu0 %v1468
        %1472 = vmatprep.subr.bf16.mxu0 0
        %1473 = vmatpush1.bf16.msra.mxu0 0
        %1474 = vmatprep.subr.bf16.mxu0 0
        %1475 = vmatpush1.bf16.msra.mxu0 0
        %1476 = vmatprep.subr.bf16.mxu0 0
        %1477 = vmatpush1.bf16.msra.mxu0 0
        %1478 = vmatprep.subr.bf16.mxu0 0
        %1479 = vmatpush1.bf16.msra.mxu0 0
        %1480 = vmatprep.subr.bf16.mxu0 0
        %1481 = vmatpush1.bf16.msra.mxu0 0
        %1482 = vmatprep.subr.bf16.mxu0 0
        %1483 = vmatpush1.bf16.msra.mxu0 0
        %1484 = vmatprep.subr.bf16.mxu0 0
        %1485 = vmatpush1.bf16.msra.mxu0 0
        %1486 = vmatprep.subr.bf16.mxu0 0
        %1487 = vmatpush1.bf16.msra.mxu0 0
        %1488 = vmatprep.subr.bf16.mxu0 0
        %1489 = vmatpush1.bf16.msra.mxu0 0
        %1490 = vmatprep.subr.bf16.mxu0 0
        %1491 = vmatpush1.bf16.msra.mxu0 0
        %1492 = vmatprep.subr.bf16.mxu0 0
        %1493 = vmatpush1.bf16.msra.mxu0 0
        %1494 = vmatprep.subr.bf16.mxu0 0
        %1495 = vmatpush1.bf16.msra.mxu0 0
        %1496 = vmatprep.subr.bf16.mxu0 0
        %1497 = vmatpush1.bf16.msra.mxu0 0
        %1498 = vmatprep.subr.bf16.mxu0 0
        %1499 = vmatpush1.bf16.msra.mxu0 0
        %1500 = vmatprep.subr.bf16.mxu0 0
        %1501 = vmatpush1.bf16.msra.mxu0 0
        %1502 = vmatprep.mubr.bf16.mxu0 0
        %1503 = vmatmul.mubr.bf16.gmra.mrb[0].mxu0 %v1465
        %v1504 = vpop.f32.mrb[0].mxu0
        %v1505 = vadd.f32 0.0, %v1504
        %v1506 = vpop.f32.mrb[0].mxu0
        %v1507 = vpop.f32.mrb[0].mxu0
        %v1508 = vpop.f32.mrb[0].mxu0
        %1509 = vdwg.mxu0
        %v1510 = vrcp.pop %v1460
        %v1511 = vmul.f32 %v1505, %v1510
        %v1512 = vpack.c.bf16 %v1511, %v1511
        %v1513 = vld [vmem:[#allocation11 + $0x30] sm:$0xf]
        %v1514 = vld [vmem:[#allocation11 + $0x34] sm:$0xf]
        %v1515 = vld [vmem:[#allocation11 + $0x38] sm:$0xf]
        %v1516 = vld [vmem:[#allocation11 + $0x3c] sm:$0xf]
        %v1521 = vunpack.c.l.b16 %v1513
        %v1522 = vunpack.c.l.b16 %v1514
        %v1523 = vunpack.c.l.b16 %v1515
        %v1524 = vunpack.c.l.b16 %v1516
        %v1525 = vpack.c.b16 %v1522, %v1521
        %v1526 = vpack.c.b16 %v1524, %v1523
        %v1530 = vsel %vm891, %v1512, 0
        %1532 = vmatprep.subr.bf16.mxu0 0
        %1533 = vmatpush1.bf16.msra.mxu0 %v1525
        %1534 = vmatprep.subr.bf16.mxu0 0
        %1535 = vmatpush1.bf16.msra.mxu0 %v1526
        %1536 = vmatprep.subr.bf16.mxu0 0
        %1537 = vmatpush1.bf16.msra.mxu0 0
        %1538 = vmatprep.subr.bf16.mxu0 0
        %1539 = vmatpush1.bf16.msra.mxu0 0
        %1540 = vmatprep.subr.bf16.mxu0 0
        %1541 = vmatpush1.bf16.msra.mxu0 0
        %1542 = vmatprep.subr.bf16.mxu0 0
        %1543 = vmatpush1.bf16.msra.mxu0 0
        %1544 = vmatprep.subr.bf16.mxu0 0
        %1545 = vmatpush1.bf16.msra.mxu0 0
        %1546 = vmatprep.subr.bf16.mxu0 0
        %1547 = vmatpush1.bf16.msra.mxu0 0
        %1548 = vmatprep.subr.bf16.mxu0 0
        %1549 = vmatpush1.bf16.msra.mxu0 0
        %1550 = vmatprep.subr.bf16.mxu0 0
        %1551 = vmatpush1.bf16.msra.mxu0 0
        %1552 = vmatprep.subr.bf16.mxu0 0
        %1553 = vmatpush1.bf16.msra.mxu0 0
        %1554 = vmatprep.subr.bf16.mxu0 0
        %1555 = vmatpush1.bf16.msra.mxu0 0
        %1556 = vmatprep.subr.bf16.mxu0 0
        %1557 = vmatpush1.bf16.msra.mxu0 0
        %1558 = vmatprep.subr.bf16.mxu0 0
        %1559 = vmatpush1.bf16.msra.mxu0 0
        %1560 = vmatprep.subr.bf16.mxu0 0
        %1561 = vmatpush1.bf16.msra.mxu0 0
        %1562 = vmatprep.subr.bf16.mxu0 0
        %1563 = vmatpush1.bf16.msra.mxu0 0
        %1564 = vmatprep.mubr.bf16.mxu0 0
        %1565 = vmatmul.mubr.bf16.gmra.mrb[0].mxu0 %v1530
        %v1566 = vpop.f32.mrb[0].mxu0
        %v1567 = vadd.f32 0.0, %v1566
        %v1568 = vpop.f32.mrb[0].mxu0
        %v1569 = vpop.f32.mrb[0].mxu0
        %v1570 = vpop.f32.mrb[0].mxu0
        %1571 = vdwg.mxu0
        %v1572 = vadd.f32 %v1401, %v1567
        %v1573 = vadd.f32 %v615, %v1572
        %v1574 = vld [vmem:[#allocation13] sm:$0x1]
        %v1576 = vlaneseq
        %v1577 = vshrl.u32 %v1576, 7
        %v1578 = vsub.s32 0, %v1577
        %v1579 = vrot.slane %v1574, %v1578
        %v1581 = vadd.f32 %v1573, %v1579
        %v1582 = vld [vmem:[#allocation14] sm:$0x1]
        %v1583 = vld [vmem:[#allocation16] sm:$0x1]
        %1584 = vadd.xlane.f32.xlu0 %v1581
        %v1585 = vpop.xlane.xlu0 %1584
        %v1586 = vmul.f32 %v1585, %v620
        %v1587 = vsub.f32 %v1581, %v1586
        %v1588 = vmul.f32 %v1587, %v1587
        %1589 = vadd.xlane.f32.xlu0 %v1588
        %v1590 = vpop.xlane.xlu0 %1589
        %v1591 = vmul.f32 %v1590, %v620
        %v1592 = vadd.f32 %v1591, 1e-05
        %v1593 = vrsqrt.pop %v1592
        %v1594 = vmul.f32 %v1587, %v1593
        %v1596 = vlaneseq
        %v1597 = vshrl.u32 %v1596, 7
        %v1598 = vsub.s32 0, %v1597
        %v1599 = vrot.slane %v1582, %v1598
        %v1601 = vmul.f32 %v1594, %v1599
        %v1603 = vlaneseq
        %v1604 = vshrl.u32 %v1603, 7
        %v1605 = vsub.s32 0, %v1604
        %v1606 = vrot.slane %v1583, %v1605
        %v1608 = vadd.f32 %v1601, %v1606
        %v1609 = vpack.c.bf16 %v1608, %v1608
        %v1610 = vld [vmem:[#allocation17] sm:$0xff]
        %v1611 = vld [vmem:[#allocation17 + $0x8] sm:$0xff]
        %v1612 = vld [vmem:[#allocation17 + $0x10] sm:$0xff]
        %v1613 = vld [vmem:[#allocation17 + $0x18] sm:$0xff]
        %v1614 = vld [vmem:[#allocation17 + $0x20] sm:$0xff]
        %v1615 = vld [vmem:[#allocation17 + $0x28] sm:$0xff]
        %v1616 = vld [vmem:[#allocation17 + $0x30] sm:$0xff]
        %v1617 = vld [vmem:[#allocation17 + $0x38] sm:$0xff]
        %v1618 = vld [vmem:[#allocation17 + $0x40] sm:$0xff]
        %v1619 = vld [vmem:[#allocation17 + $0x48] sm:$0xff]
        %v1620 = vld [vmem:[#allocation17 + $0x50] sm:$0xff]
        %v1621 = vld [vmem:[#allocation17 + $0x58] sm:$0xff]
        %v1622 = vld [vmem:[#allocation17 + $0x60] sm:$0xff]
        %v1623 = vld [vmem:[#allocation17 + $0x68] sm:$0xff]
        %v1624 = vld [vmem:[#allocation17 + $0x70] sm:$0xff]
        %v1625 = vld [vmem:[#allocation17 + $0x78] sm:$0xff]
        %v1626 = vld [vmem:[#allocation17 + $0x80] sm:$0xff]
        %v1627 = vld [vmem:[#allocation17 + $0x88] sm:$0xff]
        %v1628 = vld [vmem:[#allocation17 + $0x90] sm:$0xff]
        %v1629 = vld [vmem:[#allocation17 + $0x98] sm:$0xff]
        %v1630 = vld [vmem:[#allocation17 + $0xa0] sm:$0xff]
        %v1631 = vld [vmem:[#allocation17 + $0xa8] sm:$0xff]
        %v1632 = vld [vmem:[#allocation17 + $0xb0] sm:$0xff]
        %v1633 = vld [vmem:[#allocation17 + $0xb8] sm:$0xff]
        %v1634 = vld [vmem:[#allocation17 + $0xc0] sm:$0xff]
        %v1635 = vld [vmem:[#allocation17 + $0xc8] sm:$0xff]
        %v1636 = vld [vmem:[#allocation17 + $0xd0] sm:$0xff]
        %v1637 = vld [vmem:[#allocation17 + $0xd8] sm:$0xff]
        %v1638 = vld [vmem:[#allocation17 + $0xe0] sm:$0xff]
        %v1639 = vld [vmem:[#allocation17 + $0xe8] sm:$0xff]
        %v1640 = vld [vmem:[#allocation17 + $0xf0] sm:$0xff]
        %v1641 = vld [vmem:[#allocation17 + $0xf8] sm:$0xff]
        %v1642 = vld [vmem:[#allocation19] sm:$0xf]
        %v1644 = vlaneseq
        %v1645 = vshrl.u32 %v1644, 7
        %v1646 = vsub.s32 0, %v1645
        %v1647 = vrot.slane %v1642, %v1646
        %v1648 = vlaneseq
        %v1649 = vshrl.u32 %v1648, 7
        %v1650 = vsub.s32 1, %v1649
        %v1651 = vrot.slane %v1642, %v1650
        %v1652 = vlaneseq
        %v1653 = vshrl.u32 %v1652, 7
        %v1654 = vsub.s32 2, %v1653
        %v1655 = vrot.slane %v1642, %v1654
        %v1656 = vlaneseq
        %v1657 = vshrl.u32 %v1656, 7
        %v1658 = vsub.s32 3, %v1657
        %v1659 = vrot.slane %v1642, %v1658
        %v1696 = vunpack.c.l.b16 %v1610
        %v1697 = vunpack.c.h.b16 %v1610
        %v1698 = vunpack.c.l.b16 %v1611
        %v1699 = vunpack.c.h.b16 %v1611
        %v1700 = vunpack.c.l.b16 %v1612
        %v1701 = vunpack.c.h.b16 %v1612
        %v1702 = vunpack.c.l.b16 %v1613
        %v1703 = vunpack.c.h.b16 %v1613
        %v1704 = vunpack.c.l.b16 %v1614
        %v1705 = vunpack.c.h.b16 %v1614
        %v1706 = vunpack.c.l.b16 %v1615
        %v1707 = vunpack.c.h.b16 %v1615
        %v1708 = vunpack.c.l.b16 %v1616
        %v1709 = vunpack.c.h.b16 %v1616
        %v1710 = vunpack.c.l.b16 %v1617
        %v1711 = vunpack.c.h.b16 %v1617
        %v1712 = vunpack.c.l.b16 %v1618
        %v1713 = vunpack.c.h.b16 %v1618
        %v1714 = vunpack.c.l.b16 %v1619
        %v1715 = vunpack.c.h.b16 %v1619
        %v1716 = vunpack.c.l.b16 %v1620
        %v1717 = vunpack.c.h.b16 %v1620
        %v1718 = vunpack.c.l.b16 %v1621
        %v1719 = vunpack.c.h.b16 %v1621
        %v1720 = vunpack.c.l.b16 %v1622
        %v1721 = vunpack.c.h.b16 %v1622
        %v1722 = vunpack.c.l.b16 %v1623
        %v1723 = vunpack.c.h.b16 %v1623
        %v1724 = vunpack.c.l.b16 %v1624
        %v1725 = vunpack.c.h.b16 %v1624
        %v1726 = vunpack.c.l.b16 %v1625
        %v1727 = vunpack.c.h.b16 %v1625
        %v1728 = vunpack.c.l.b16 %v1626
        %v1729 = vunpack.c.h.b16 %v1626
        %v1730 = vunpack.c.l.b16 %v1627
        %v1731 = vunpack.c.h.b16 %v1627
        %v1732 = vunpack.c.l.b16 %v1628
        %v1733 = vunpack.c.h.b16 %v1628
        %v1734 = vunpack.c.l.b16 %v1629
        %v1735 = vunpack.c.h.b16 %v1629
        %v1736 = vunpack.c.l.b16 %v1630
        %v1737 = vunpack.c.h.b16 %v1630
        %v1738 = vunpack.c.l.b16 %v1631
        %v1739 = vunpack.c.h.b16 %v1631
        %v1740 = vunpack.c.l.b16 %v1632
        %v1741 = vunpack.c.h.b16 %v1632
        %v1742 = vunpack.c.l.b16 %v1633
        %v1743 = vunpack.c.h.b16 %v1633
        %v1744 = vunpack.c.l.b16 %v1634
        %v1745 = vunpack.c.h.b16 %v1634
        %v1746 = vunpack.c.l.b16 %v1635
        %v1747 = vunpack.c.h.b16 %v1635
        %v1748 = vunpack.c.l.b16 %v1636
        %v1749 = vunpack.c.h.b16 %v1636
        %v1750 = vunpack.c.l.b16 %v1637
        %v1751 = vunpack.c.h.b16 %v1637
        %v1752 = vunpack.c.l.b16 %v1638
        %v1753 = vunpack.c.h.b16 %v1638
        %v1754 = vunpack.c.l.b16 %v1639
        %v1755 = vunpack.c.h.b16 %v1639
        %v1756 = vunpack.c.l.b16 %v1640
        %v1757 = vunpack.c.h.b16 %v1640
        %v1758 = vunpack.c.l.b16 %v1641
        %v1759 = vunpack.c.h.b16 %v1641
        %v1760 = vpack.c.b16 %v1700, %v1696
        %v1761 = vpack.c.b16 %v1701, %v1697
        %v1762 = vpack.c.b16 %v1702, %v1698
        %v1763 = vpack.c.b16 %v1703, %v1699
        %v1764 = vpack.c.b16 %v1708, %v1704
        %v1765 = vpack.c.b16 %v1709, %v1705
        %v1766 = vpack.c.b16 %v1710, %v1706
        %v1767 = vpack.c.b16 %v1711, %v1707
        %v1768 = vpack.c.b16 %v1716, %v1712
        %v1769 = vpack.c.b16 %v1717, %v1713
        %v1770 = vpack.c.b16 %v1718, %v1714
        %v1771 = vpack.c.b16 %v1719, %v1715
        %v1772 = vpack.c.b16 %v1724, %v1720
        %v1773 = vpack.c.b16 %v1725, %v1721
        %v1774 = vpack.c.b16 %v1726, %v1722
        %v1775 = vpack.c.b16 %v1727, %v1723
        %v1776 = vpack.c.b16 %v1732, %v1728
        %v1777 = vpack.c.b16 %v1733, %v1729
        %v1778 = vpack.c.b16 %v1734, %v1730
        %v1779 = vpack.c.b16 %v1735, %v1731
        %v1780 = vpack.c.b16 %v1740, %v1736
        %v1781 = vpack.c.b16 %v1741, %v1737
        %v1782 = vpack.c.b16 %v1742, %v1738
        %v1783 = vpack.c.b16 %v1743, %v1739
        %v1784 = vpack.c.b16 %v1748, %v1744
        %v1785 = vpack.c.b16 %v1749, %v1745
        %v1786 = vpack.c.b16 %v1750, %v1746
        %v1787 = vpack.c.b16 %v1751, %v1747
        %v1788 = vpack.c.b16 %v1756, %v1752
        %v1789 = vpack.c.b16 %v1757, %v1753
        %v1790 = vpack.c.b16 %v1758, %v1754
        %v1791 = vpack.c.b16 %v1759, %v1755
        %1824 = vmatprep.subr.bf16.mxu0 %v1761
        %1825 = vmatpush1.bf16.msra.mxu0 %v1760
        %1826 = vmatprep.subr.bf16.mxu0 %v1765
        %1827 = vmatpush1.bf16.msra.mxu0 %v1764
        %1828 = vmatprep.subr.bf16.mxu0 %v1769
        %1829 = vmatpush1.bf16.msra.mxu0 %v1768
        %1830 = vmatprep.subr.bf16.mxu0 %v1773
        %1831 = vmatpush1.bf16.msra.mxu0 %v1772
        %1832 = vmatprep.subr.bf16.mxu0 %v1777
        %1833 = vmatpush1.bf16.msra.mxu0 %v1776
        %1834 = vmatprep.subr.bf16.mxu0 %v1781
        %1835 = vmatpush1.bf16.msra.mxu0 %v1780
        %1836 = vmatprep.subr.bf16.mxu0 %v1785
        %1837 = vmatpush1.bf16.msra.mxu0 %v1784
        %1838 = vmatprep.subr.bf16.mxu0 %v1789
        %1839 = vmatpush1.bf16.msra.mxu0 %v1788
        %1840 = vmatprep.subr.bf16.mxu0 0
        %1841 = vmatpush1.bf16.msra.mxu0 0
        %1842 = vmatprep.subr.bf16.mxu0 0
        %1843 = vmatpush1.bf16.msra.mxu0 0
        %1844 = vmatprep.subr.bf16.mxu0 0
        %1845 = vmatpush1.bf16.msra.mxu0 0
        %1846 = vmatprep.subr.bf16.mxu0 0
        %1847 = vmatpush1.bf16.msra.mxu0 0
        %1848 = vmatprep.subr.bf16.mxu0 0
        %1849 = vmatpush1.bf16.msra.mxu0 0
        %1850 = vmatprep.subr.bf16.mxu0 0
        %1851 = vmatpush1.bf16.msra.mxu0 0
        %1852 = vmatprep.subr.bf16.mxu0 0
        %1853 = vmatpush1.bf16.msra.mxu0 0
        %1854 = vmatprep.subr.bf16.mxu0 0
        %1855 = vmatpush1.bf16.msra.mxu0 0
        %1856 = vmatprep.mubr.bf16.mxu0 0
        %1857 = vmatmul.mubr.bf16.gmra.mrb[0].mxu0 %v1609
        %v1858 = vpop.f32.mrb[0].mxu0
        %v1859 = vadd.f32 %v1647, %v1858
        %v1860 = vpop.f32.mrb[0].mxu0
        %v1861 = vadd.f32 %v1651, %v1860
        %v1862 = vpop.f32.mrb[0].mxu0
        %v1863 = vpop.f32.mrb[0].mxu0
        %1864 = vdwg.mxu0
        %1865 = vmatprep.subr.bf16.mxu0 %v1763
        %1866 = vmatpush1.bf16.msra.mxu0 %v1762
        %1867 = vmatprep.subr.bf16.mxu0 %v1767
        %1868 = vmatpush1.bf16.msra.mxu0 %v1766
        %1869 = vmatprep.subr.bf16.mxu0 %v1771
        %1870 = vmatpush1.bf16.msra.mxu0 %v1770
        %1871 = vmatprep.subr.bf16.mxu0 %v1775
        %1872 = vmatpush1.bf16.msra.mxu0 %v1774
        %1873 = vmatprep.subr.bf16.mxu0 %v1779
        %1874 = vmatpush1.bf16.msra.mxu0 %v1778
        %1875 = vmatprep.subr.bf16.mxu0 %v1783
        %1876 = vmatpush1.bf16.msra.mxu0 %v1782
        %1877 = vmatprep.subr.bf16.mxu0 %v1787
        %1878 = vmatpush1.bf16.msra.mxu0 %v1786
        %1879 = vmatprep.subr.bf16.mxu0 %v1791
        %1880 = vmatpush1.bf16.msra.mxu0 %v1790
        %1881 = vmatprep.subr.bf16.mxu0 0
        %1882 = vmatpush1.bf16.msra.mxu0 0
        %1883 = vmatprep.subr.bf16.mxu0 0
        %1884 = vmatpush1.bf16.msra.mxu0 0
        %1885 = vmatprep.subr.bf16.mxu0 0
        %1886 = vmatpush1.bf16.msra.mxu0 0
        %1887 = vmatprep.subr.bf16.mxu0 0
        %1888 = vmatpush1.bf16.msra.mxu0 0
        %1889 = vmatprep.subr.bf16.mxu0 0
        %1890 = vmatpush1.bf16.msra.mxu0 0
        %1891 = vmatprep.subr.bf16.mxu0 0
        %1892 = vmatpush1.bf16.msra.mxu0 0
        %1893 = vmatprep.subr.bf16.mxu0 0
        %1894 = vmatpush1.bf16.msra.mxu0 0
        %1895 = vmatprep.subr.bf16.mxu0 0
        %1896 = vmatpush1.bf16.msra.mxu0 0
        %1897 = vmatprep.mubr.bf16.mxu0 0
        %1898 = vmatmul.mubr.bf16.gmra.mrb[0].mxu0 %v1609
        %v1899 = vpop.f32.mrb[0].mxu0
        %v1900 = vadd.f32 %v1655, %v1899
        %v1901 = vpop.f32.mrb[0].mxu0
        %v1902 = vadd.f32 %v1659, %v1901
        %v1903 = vpop.f32.mrb[0].mxu0
        %v1904 = vpop.f32.mrb[0].mxu0
        %1905 = vdwg.mxu0
        %v1906 = vmax.f32 %v1859, 0.0
        %v1907 = vmax.f32 %v1861, 0.0
        %v1908 = vmax.f32 %v1900, 0.0
        %v1909 = vmax.f32 %v1902, 0.0
        %v1910 = vpack.c.bf16 %v1906, %v1906
        %v1911 = vpack.c.bf16 %v1907, %v1907
        %v1912 = vpack.c.bf16 %v1908, %v1908
        %v1913 = vpack.c.bf16 %v1909, %v1909
        %v1914 = vld [vmem:[#allocation20] sm:$0xf]
        %v1915 = vld [vmem:[#allocation20 + $0x4] sm:$0xf]
        %v1916 = vld [vmem:[#allocation20 + $0x8] sm:$0xf]
        %v1917 = vld [vmem:[#allocation20 + $0xc] sm:$0xf]
        %v1918 = vld [vmem:[#allocation20 + $0x10] sm:$0xf]
        %v1919 = vld [vmem:[#allocation20 + $0x14] sm:$0xf]
        %v1920 = vld [vmem:[#allocation20 + $0x18] sm:$0xf]
        %v1921 = vld [vmem:[#allocation20 + $0x1c] sm:$0xf]
        %v1922 = vld [vmem:[#allocation20 + $0x20] sm:$0xf]
        %v1923 = vld [vmem:[#allocation20 + $0x24] sm:$0xf]
        %v1924 = vld [vmem:[#allocation20 + $0x28] sm:$0xf]
        %v1925 = vld [vmem:[#allocation20 + $0x2c] sm:$0xf]
        %v1926 = vld [vmem:[#allocation20 + $0x30] sm:$0xf]
        %v1927 = vld [vmem:[#allocation20 + $0x34] sm:$0xf]
        %v1928 = vld [vmem:[#allocation20 + $0x38] sm:$0xf]
        %v1929 = vld [vmem:[#allocation20 + $0x3c] sm:$0xf]
        %v1930 = vld [vmem:[#allocation20 + $0x40] sm:$0xf]
        %v1931 = vld [vmem:[#allocation20 + $0x44] sm:$0xf]
        %v1932 = vld [vmem:[#allocation20 + $0x48] sm:$0xf]
        %v1933 = vld [vmem:[#allocation20 + $0x4c] sm:$0xf]
        %v1934 = vld [vmem:[#allocation20 + $0x50] sm:$0xf]
        %v1935 = vld [vmem:[#allocation20 + $0x54] sm:$0xf]
        %v1936 = vld [vmem:[#allocation20 + $0x58] sm:$0xf]
        %v1937 = vld [vmem:[#allocation20 + $0x5c] sm:$0xf]
        %v1938 = vld [vmem:[#allocation20 + $0x60] sm:$0xf]
        %v1939 = vld [vmem:[#allocation20 + $0x64] sm:$0xf]
        %v1940 = vld [vmem:[#allocation20 + $0x68] sm:$0xf]
        %v1941 = vld [vmem:[#allocation20 + $0x6c] sm:$0xf]
        %v1942 = vld [vmem:[#allocation20 + $0x70] sm:$0xf]
        %v1943 = vld [vmem:[#allocation20 + $0x74] sm:$0xf]
        %v1944 = vld [vmem:[#allocation20 + $0x78] sm:$0xf]
        %v1945 = vld [vmem:[#allocation20 + $0x7c] sm:$0xf]
        %v1946 = vld [vmem:[#allocation20 + $0x80] sm:$0xf]
        %v1947 = vld [vmem:[#allocation20 + $0x84] sm:$0xf]
        %v1948 = vld [vmem:[#allocation20 + $0x88] sm:$0xf]
        %v1949 = vld [vmem:[#allocation20 + $0x8c] sm:$0xf]
        %v1950 = vld [vmem:[#allocation20 + $0x90] sm:$0xf]
        %v1951 = vld [vmem:[#allocation20 + $0x94] sm:$0xf]
        %v1952 = vld [vmem:[#allocation20 + $0x98] sm:$0xf]
        %v1953 = vld [vmem:[#allocation20 + $0x9c] sm:$0xf]
        %v1954 = vld [vmem:[#allocation20 + $0xa0] sm:$0xf]
        %v1955 = vld [vmem:[#allocation20 + $0xa4] sm:$0xf]
        %v1956 = vld [vmem:[#allocation20 + $0xa8] sm:$0xf]
        %v1957 = vld [vmem:[#allocation20 + $0xac] sm:$0xf]
        %v1958 = vld [vmem:[#allocation20 + $0xb0] sm:$0xf]
        %v1959 = vld [vmem:[#allocation20 + $0xb4] sm:$0xf]
        %v1960 = vld [vmem:[#allocation20 + $0xb8] sm:$0xf]
        %v1961 = vld [vmem:[#allocation20 + $0xbc] sm:$0xf]
        %v1962 = vld [vmem:[#allocation20 + $0xc0] sm:$0xf]
        %v1963 = vld [vmem:[#allocation20 + $0xc4] sm:$0xf]
        %v1964 = vld [vmem:[#allocation20 + $0xc8] sm:$0xf]
        %v1965 = vld [vmem:[#allocation20 + $0xcc] sm:$0xf]
        %v1966 = vld [vmem:[#allocation20 + $0xd0] sm:$0xf]
        %v1967 = vld [vmem:[#allocation20 + $0xd4] sm:$0xf]
        %v1968 = vld [vmem:[#allocation20 + $0xd8] sm:$0xf]
        %v1969 = vld [vmem:[#allocation20 + $0xdc] sm:$0xf]
        %v1970 = vld [vmem:[#allocation20 + $0xe0] sm:$0xf]
        %v1971 = vld [vmem:[#allocation20 + $0xe4] sm:$0xf]
        %v1972 = vld [vmem:[#allocation20 + $0xe8] sm:$0xf]
        %v1973 = vld [vmem:[#allocation20 + $0xec] sm:$0xf]
        %v1974 = vld [vmem:[#allocation20 + $0xf0] sm:$0xf]
        %v1975 = vld [vmem:[#allocation20 + $0xf4] sm:$0xf]
        %v1976 = vld [vmem:[#allocation20 + $0xf8] sm:$0xf]
        %v1977 = vld [vmem:[#allocation20 + $0xfc] sm:$0xf]
        %v1978 = vld [vmem:[#allocation22] sm:$0x1]
        %v1980 = vlaneseq
        %v1981 = vshrl.u32 %v1980, 7
        %v1982 = vsub.s32 0, %v1981
        %v1983 = vrot.slane %v1978, %v1982
        %v2049 = vunpack.c.l.b16 %v1914
        %v2050 = vunpack.c.l.b16 %v1915
        %v2051 = vunpack.c.l.b16 %v1916
        %v2052 = vunpack.c.l.b16 %v1917
        %v2053 = vunpack.c.l.b16 %v1918
        %v2054 = vunpack.c.l.b16 %v1919
        %v2055 = vunpack.c.l.b16 %v1920
        %v2056 = vunpack.c.l.b16 %v1921
        %v2057 = vunpack.c.l.b16 %v1922
        %v2058 = vunpack.c.l.b16 %v1923
        %v2059 = vunpack.c.l.b16 %v1924
        %v2060 = vunpack.c.l.b16 %v1925
        %v2061 = vunpack.c.l.b16 %v1926
        %v2062 = vunpack.c.l.b16 %v1927
        %v2063 = vunpack.c.l.b16 %v1928
        %v2064 = vunpack.c.l.b16 %v1929
        %v2065 = vunpack.c.l.b16 %v1930
        %v2066 = vunpack.c.l.b16 %v1931
        %v2067 = vunpack.c.l.b16 %v1932
        %v2068 = vunpack.c.l.b16 %v1933
        %v2069 = vunpack.c.l.b16 %v1934
        %v2070 = vunpack.c.l.b16 %v1935
        %v2071 = vunpack.c.l.b16 %v1936
        %v2072 = vunpack.c.l.b16 %v1937
        %v2073 = vunpack.c.l.b16 %v1938
        %v2074 = vunpack.c.l.b16 %v1939
        %v2075 = vunpack.c.l.b16 %v1940
        %v2076 = vunpack.c.l.b16 %v1941
        %v2077 = vunpack.c.l.b16 %v1942
        %v2078 = vunpack.c.l.b16 %v1943
        %v2079 = vunpack.c.l.b16 %v1944
        %v2080 = vunpack.c.l.b16 %v1945
        %v2081 = vunpack.c.l.b16 %v1946
        %v2082 = vunpack.c.l.b16 %v1947
        %v2083 = vunpack.c.l.b16 %v1948
        %v2084 = vunpack.c.l.b16 %v1949
        %v2085 = vunpack.c.l.b16 %v1950
        %v2086 = vunpack.c.l.b16 %v1951
        %v2087 = vunpack.c.l.b16 %v1952
        %v2088 = vunpack.c.l.b16 %v1953
        %v2089 = vunpack.c.l.b16 %v1954
        %v2090 = vunpack.c.l.b16 %v1955
        %v2091 = vunpack.c.l.b16 %v1956
        %v2092 = vunpack.c.l.b16 %v1957
        %v2093 = vunpack.c.l.b16 %v1958
        %v2094 = vunpack.c.l.b16 %v1959
        %v2095 = vunpack.c.l.b16 %v1960
        %v2096 = vunpack.c.l.b16 %v1961
        %v2097 = vunpack.c.l.b16 %v1962
        %v2098 = vunpack.c.l.b16 %v1963
        %v2099 = vunpack.c.l.b16 %v1964
        %v2100 = vunpack.c.l.b16 %v1965
        %v2101 = vunpack.c.l.b16 %v1966
        %v2102 = vunpack.c.l.b16 %v1967
        %v2103 = vunpack.c.l.b16 %v1968
        %v2104 = vunpack.c.l.b16 %v1969
        %v2105 = vunpack.c.l.b16 %v1970
        %v2106 = vunpack.c.l.b16 %v1971
        %v2107 = vunpack.c.l.b16 %v1972
        %v2108 = vunpack.c.l.b16 %v1973
        %v2109 = vunpack.c.l.b16 %v1974
        %v2110 = vunpack.c.l.b16 %v1975
        %v2111 = vunpack.c.l.b16 %v1976
        %v2112 = vunpack.c.l.b16 %v1977
        %v2113 = vpack.c.b16 %v2050, %v2049
        %v2114 = vpack.c.b16 %v2052, %v2051
        %v2115 = vpack.c.b16 %v2054, %v2053
        %v2116 = vpack.c.b16 %v2056, %v2055
        %v2117 = vpack.c.b16 %v2058, %v2057
        %v2118 = vpack.c.b16 %v2060, %v2059
        %v2119 = vpack.c.b16 %v2062, %v2061
        %v2120 = vpack.c.b16 %v2064, %v2063
        %v2121 = vpack.c.b16 %v2066, %v2065
        %v2122 = vpack.c.b16 %v2068, %v2067
        %v2123 = vpack.c.b16 %v2070, %v2069
        %v2124 = vpack.c.b16 %v2072, %v2071
        %v2125 = vpack.c.b16 %v2074, %v2073
        %v2126 = vpack.c.b16 %v2076, %v2075
        %v2127 = vpack.c.b16 %v2078, %v2077
        %v2128 = vpack.c.b16 %v2080, %v2079
        %v2129 = vpack.c.b16 %v2082, %v2081
        %v2130 = vpack.c.b16 %v2084, %v2083
        %v2131 = vpack.c.b16 %v2086, %v2085
        %v2132 = vpack.c.b16 %v2088, %v2087
        %v2133 = vpack.c.b16 %v2090, %v2089
        %v2134 = vpack.c.b16 %v2092, %v2091
        %v2135 = vpack.c.b16 %v2094, %v2093
        %v2136 = vpack.c.b16 %v2096, %v2095
        %v2137 = vpack.c.b16 %v2098, %v2097
        %v2138 = vpack.c.b16 %v2100, %v2099
        %v2139 = vpack.c.b16 %v2102, %v2101
        %v2140 = vpack.c.b16 %v2104, %v2103
        %v2141 = vpack.c.b16 %v2106, %v2105
        %v2142 = vpack.c.b16 %v2108, %v2107
        %v2143 = vpack.c.b16 %v2110, %v2109
        %v2144 = vpack.c.b16 %v2112, %v2111
        %2177 = vmatprep.subr.bf16.mxu0 0
        %2178 = vmatpush1.bf16.msra.mxu0 %v2113
        %2179 = vmatprep.subr.bf16.mxu0 0
        %2180 = vmatpush1.bf16.msra.mxu0 %v2114
        %2181 = vmatprep.subr.bf16.mxu0 0
        %2182 = vmatpush1.bf16.msra.mxu0 %v2115
        %2183 = vmatprep.subr.bf16.mxu0 0
        %2184 = vmatpush1.bf16.msra.mxu0 %v2116
        %2185 = vmatprep.subr.bf16.mxu0 0
        %2186 = vmatpush1.bf16.msra.mxu0 %v2117
        %2187 = vmatprep.subr.bf16.mxu0 0
        %2188 = vmatpush1.bf16.msra.mxu0 %v2118
        %2189 = vmatprep.subr.bf16.mxu0 0
        %2190 = vmatpush1.bf16.msra.mxu0 %v2119
        %2191 = vmatprep.subr.bf16.mxu0 0
        %2192 = vmatpush1.bf16.msra.mxu0 %v2120
        %2193 = vmatprep.subr.bf16.mxu0 0
        %2194 = vmatpush1.bf16.msra.mxu0 %v2121
        %2195 = vmatprep.subr.bf16.mxu0 0
        %2196 = vmatpush1.bf16.msra.mxu0 %v2122
        %2197 = vmatprep.subr.bf16.mxu0 0
        %2198 = vmatpush1.bf16.msra.mxu0 %v2123
        %2199 = vmatprep.subr.bf16.mxu0 0
        %2200 = vmatpush1.bf16.msra.mxu0 %v2124
        %2201 = vmatprep.subr.bf16.mxu0 0
        %2202 = vmatpush1.bf16.msra.mxu0 %v2125
        %2203 = vmatprep.subr.bf16.mxu0 0
        %2204 = vmatpush1.bf16.msra.mxu0 %v2126
        %2205 = vmatprep.subr.bf16.mxu0 0
        %2206 = vmatpush1.bf16.msra.mxu0 %v2127
        %2207 = vmatprep.subr.bf16.mxu0 0
        %2208 = vmatpush1.bf16.msra.mxu0 %v2128
        %2209 = vmatprep.mubr.bf16.mxu0 %v1911
        %2210 = vmatmul.mubr.bf16.gmra.mrb[0].mxu0 %v1910
        %v2211 = vpop.f32.mrb[0].mxu0
        %v2212 = vadd.f32 %v1983, %v2211
        %v2213 = vpop.f32.mrb[0].mxu0
        %v2214 = vpop.f32.mrb[0].mxu0
        %v2215 = vpop.f32.mrb[0].mxu0
        %2216 = vdwg.mxu0
        %2217 = vmatprep.subr.bf16.mxu0 0
        %2218 = vmatpush1.bf16.msra.mxu0 %v2129
        %2219 = vmatprep.subr.bf16.mxu0 0
        %2220 = vmatpush1.bf16.msra.mxu0 %v2130
        %2221 = vmatprep.subr.bf16.mxu0 0
        %2222 = vmatpush1.bf16.msra.mxu0 %v2131
        %2223 = vmatprep.subr.bf16.mxu0 0
        %2224 = vmatpush1.bf16.msra.mxu0 %v2132
        %2225 = vmatprep.subr.bf16.mxu0 0
        %2226 = vmatpush1.bf16.msra.mxu0 %v2133
        %2227 = vmatprep.subr.bf16.mxu0 0
        %2228 = vmatpush1.bf16.msra.mxu0 %v2134
        %2229 = vmatprep.subr.bf16.mxu0 0
        %2230 = vmatpush1.bf16.msra.mxu0 %v2135
        %2231 = vmatprep.subr.bf16.mxu0 0
        %2232 = vmatpush1.bf16.msra.mxu0 %v2136
        %2233 = vmatprep.subr.bf16.mxu0 0
        %2234 = vmatpush1.bf16.msra.mxu0 %v2137
        %2235 = vmatprep.subr.bf16.mxu0 0
        %2236 = vmatpush1.bf16.msra.mxu0 %v2138
        %2237 = vmatprep.subr.bf16.mxu0 0
        %2238 = vmatpush1.bf16.msra.mxu0 %v2139
        %2239 = vmatprep.subr.bf16.mxu0 0
        %2240 = vmatpush1.bf16.msra.mxu0 %v2140
        %2241 = vmatprep.subr.bf16.mxu0 0
        %2242 = vmatpush1.bf16.msra.mxu0 %v2141
        %2243 = vmatprep.subr.bf16.mxu0 0
        %2244 = vmatpush1.bf16.msra.mxu0 %v2142
        %2245 = vmatprep.subr.bf16.mxu0 0
        %2246 = vmatpush1.bf16.msra.mxu0 %v2143
        %2247 = vmatprep.subr.bf16.mxu0 0
        %2248 = vmatpush1.bf16.msra.mxu0 %v2144
        %2249 = vmatprep.mubr.bf16.mxu0 %v1913
        %2250 = vmatmul.mubr.bf16.gmra.mrb[0].mxu0 %v1912
        %v2251 = vpop.f32.mrb[0].mxu0
        %v2252 = vadd.f32 %v2212, %v2251
        %v2253 = vpop.f32.mrb[0].mxu0
        %v2254 = vpop.f32.mrb[0].mxu0
        %v2255 = vpop.f32.mrb[0].mxu0
        %2256 = vdwg.mxu0
        %v2257 = vadd.f32 %v1581, %v2252
        %2258 = vst [vmem:[%s613] sm:$0xff] %v2257
        %s2259 = sand.u32 %s322, 1
        %s2260 = scalar_lea.sflag [#allocation4], %s2259
        %s2261 = sand.u32 %s322, 1
        %s2262 = smul.addr %s2261, 8
        %s2263 = scalar_lea.vmem [#allocation23], %s2262
        // Predicated region
        $region125: #{tpu_custom_call.1} parent=71 // pred_check
          %p2264 = pneg %p332
        $region126: #{tpu_custom_call.1} parent=71 // pred_check_branch
          %2266 = sbr.rel (%p2264) target = $region128
        $region127: #{tpu_custom_call.1} parent=71 // pred_region
          %s2268 = ssub.s32 128, 128
          %2269 = vsyncadd %s2260, %s2268
          %s2270 = smul.addr %s36, 128
          %s2271 = scalar_lea.hbm %s13, %s2270
          %s2273 = sshll.u32 %s2263, 4
          %s2274 = int_to_ptr.vmem [resolvable:$true] %s2273
          %2276 = dma.vmem_to_hbm [thread:$0]  %s2274, 128, %s2271, %s2260
        $region128: #{tpu_custom_call.1} parent=71 // pred_fallthru
          _
      $region72: #{tpu_custom_call.1} parent=5 // pred_fallthru
        _
      %p2277 = scmp.le.s32.totalorder 2, %s31
      // Predicated region
      $region129: #{tpu_custom_call.1} parent=5 // pred_check
        %p2278 = pneg %p2277
      $region130: #{tpu_custom_call.1} parent=5 // pred_check_branch
        %2280 = sbr.rel (%p2278) target = $region132
      $region131: #{tpu_custom_call.1} parent=5 // pred_region
        %s2281 = ssub.s32 %s31, 2
        // Predicated region
        $region133: #{tpu_custom_call.1} parent=131 // pred_check
          %p2282 = pneg %p338
        $region134: #{tpu_custom_call.1} parent=131 // pred_check_branch
          %2284 = sbr.rel (%p2282) target = $region136
        $region135: #{tpu_custom_call.1} parent=131 // pred_region
          %s2285 = sand.u32 %s323, 1
          %s2286 = scalar_lea.sflag [#allocation4], %s2285
          %s2287 = sand.u32 %s323, 1
          %s2288 = smul.addr %s2287, 8
          %s2289 = scalar_lea.vmem [#allocation23], %s2288
          %2290 = dma.done %s2286, 128
        $region136: #{tpu_custom_call.1} parent=131 // pred_fallthru
          _
      $region132: #{tpu_custom_call.1} parent=5 // pred_fallthru
        _
    $region6: #{tpu_custom_call.1} parent=1 // loop_footer
      %s35 = sadd.s32 1, %s31
    $region7: #{tpu_custom_call.1} parent=1 // loop_footer_branch
      %30 = sbr.rel target = $region3
    $region8: #{tpu_custom_call.1} parent=1 // loop_exit
      _
    %2291 = vsyncpa [#allocation3], 1
    %s2292 = scalar_lea.sflag [#allocation3], 1
    %2293 = vsyncpa %s2292, 1
    %2294 = vsyncpa [#allocation6], 1
    %2295 = vsyncpa [#allocation9], 1
    %2296 = vsyncpa [#allocation12], 1
    %2297 = vsyncpa [#allocation15], 1
    %2298 = vsyncpa [#allocation18], 1
    %2299 = vsyncpa [#allocation21], 1
    %2300 = vsyncpa [#allocation4], 1
    %s2301 = scalar_lea.sflag [#allocation4], 1
    %2302 = vsyncpa %s2301, 1

</llo_original>
